<compile_context>
chip_gen: v5e
topology: v5e:2x2
jax: 0.10.0
libtpu: 0.0.40
codegen_flags: <defaults>
</compile_context>

<pallas_src>
import jax
import jax.numpy as jnp
from jax.experimental import pallas as pl
from jax.experimental.pallas import tpu as pltpu

_LANE = 128
_SUBLANE = 8


def _round_up(n, m):
    return ((n + m - 1) // m) * m


def encoder_kernel(x_ref, w1_ref, b1_ref, w2_ref, b2_ref,
                   w3_ref, b3_ref, w4_ref, b4_ref, o_ref):
    # layer 1: (tb, D_in) @ (D_in, H) + (1, H) -> ReLU   (bf16 operands, f32 acc)
    h = jnp.dot(x_ref[...], w1_ref[...], preferred_element_type=jnp.float32)
    h = jnp.maximum(h + b1_ref[...], 0.0)
    # layer 2
    h = jnp.dot(h.astype(jnp.bfloat16), w2_ref[...],
                preferred_element_type=jnp.float32)
    h = jnp.maximum(h + b2_ref[...], 0.0)
    # layer 3
    h = jnp.dot(h.astype(jnp.bfloat16), w3_ref[...],
                preferred_element_type=jnp.float32)
    h = jnp.maximum(h + b3_ref[...], 0.0)
    # layer 4 (no activation)
    out = jnp.dot(h.astype(jnp.bfloat16), w4_ref[...],
                  preferred_element_type=jnp.float32)
    o_ref[...] = (out + b4_ref[...]).astype(o_ref.dtype)


def clinical_vae_forward(x, params, *, block_b=256):
    """Pallas implementation of ClinicalVAE.forward (the encoder MLP).

    x: (B, input_dimension) float32
    params: dict with w1..w4 stored as (in, out) f32 and b1..b4 as (1, out) f32
            (torch Linear weight transposed so the kernel does x @ W + b).
    """
    B, D_in = x.shape
    ws = [params["w1"], params["w2"], params["w3"], params["w4"]]
    bs = [params["b1"], params["b2"], params["b3"], params["b4"]]
    D_out = ws[-1].shape[1]

    # --- batch tile -----------------------------------------------------
    assert block_b % _SUBLANE == 0, "block_b must be a multiple of 8 (f32 sublanes)"
    tb = max(_SUBLANE, min(block_b, _round_up(B, _SUBLANE)))
    tb = _round_up(tb, _SUBLANE)
    B_pad = _round_up(B, tb)
    grid = (B_pad // tb,)

    # --- pad feature dims to lane multiples, pack weights as bf16 --------
    D_in_p = _round_up(D_in, _LANE)
    ws_p, bs_p = [], []
    for w, b in zip(ws, bs):
        k, n = w.shape
        k_p, n_p = _round_up(k, _LANE), _round_up(n, _LANE)
        ws_p.append(jnp.pad(w, ((0, k_p - k), (0, n_p - n))).astype(jnp.bfloat16))
        bs_p.append(jnp.pad(b, ((0, 0), (0, n_p - b.shape[1]))).astype(jnp.float32))
    D_out_p = ws_p[-1].shape[1]

    x_p = jnp.pad(x, ((0, B_pad - B), (0, D_in_p - D_in))).astype(jnp.bfloat16)

    # --- specs ------------------------------------------------------------
    in_specs = [pl.BlockSpec((tb, D_in_p), lambda i: (i, 0))]
    for w_p, b_p in zip(ws_p, bs_p):
        in_specs.append(pl.BlockSpec(w_p.shape, lambda i: (0, 0)))   # resident
        in_specs.append(pl.BlockSpec(b_p.shape, lambda i: (0, 0)))   # resident
    out_spec = pl.BlockSpec((tb, D_out_p), lambda i: (i, 0))

    # --- VMEM / cost planning --------------------------------------------
    w_bytes = sum(int(w.size) * 2 for w in ws_p) + sum(int(b.size) * 4 for b in bs_p)
    io_bytes = 2 * (tb * D_in_p * 2 + tb * D_out_p * 4)          # double-buffered tiles
    act_bytes = 2 * tb * max(w.shape[1] for w in ws_p) * 4       # live f32 intermediates
    # weights are double-buffered by default too -> budget 2x; cap at 64 MiB (v7x physical).
    vmem_limit = int(min(max((2 * w_bytes + io_bytes + act_bytes) * 1.2,
                             32 * 1024 * 1024), 64 * 1024 * 1024))
    # TODO(synk): for very large input_dimension on v7x (w1 alone > ~32 MiB),
    # add a K-reduction grid axis / emit_pipeline over D_in chunks for layer 1.

    flops = 2 * B_pad * sum(w.shape[0] * w.shape[1] for w in ws_p)
    bytes_accessed = (int(x_p.size) * 2 + B_pad * D_out_p * 4 + w_bytes)
    cost = pl.CostEstimate(flops=flops, transcendentals=0,
                           bytes_accessed=bytes_accessed)

    out = pl.pallas_call(
        encoder_kernel,
        out_shape=jax.ShapeDtypeStruct((B_pad, D_out_p), jnp.float32),
        grid_spec=pltpu.PrefetchScalarGridSpec(
            num_scalar_prefetch=0,
            grid=grid,
            in_specs=in_specs,
            out_specs=out_spec,
        ),
        compiler_params=pltpu.CompilerParams(
            dimension_semantics=("parallel",),
            vmem_limit_bytes=vmem_limit),
        cost_estimate=cost,
    )(x_p, ws_p[0], bs_p[0], ws_p[1], bs_p[1], ws_p[2], bs_p[2], ws_p[3], bs_p[3])

    return out[:B, :D_out]


def init_params(key, input_dimension, hidden_layer_width, latent_dimension):
    """Deterministic synthetic parameters matching the encoder's Linear shapes.

    torch.nn.Linear(in, out) has weight (out, in); stored transposed as (in, out).
    """
    dims = [
        (input_dimension, hidden_layer_width),   # Linear(D_in, H)
        (hidden_layer_width, 500),               # Linear(H, 500)
        (500, 100),                              # Linear(500, 100)
        (100, 2 * latent_dimension),             # Linear(100, 2*latent)
    ]
    params = {}
    keys = jax.random.split(key, 2 * len(dims))
    for idx, (d_in, d_out) in enumerate(dims):
        scale = 1.0 / jnp.sqrt(jnp.float32(d_in))
        params[f"w{idx+1}"] = (
            jax.random.normal(keys[2 * idx], (d_in, d_out), jnp.float32) * scale)
        params[f"b{idx+1}"] = (
            jax.random.normal(keys[2 * idx + 1], (1, d_out), jnp.float32) * 0.01)
    return params


def reference_forward(x, p):
    """Pure-JAX reference using the same bf16-operand / f32-accumulate math."""
    def mm(a, w):
        return jnp.dot(a.astype(jnp.bfloat16), w.astype(jnp.bfloat16),
                       preferred_element_type=jnp.float32)
    h = jnp.maximum(mm(x, p["w1"]) + p["b1"], 0.0)
    h = jnp.maximum(mm(h, p["w2"]) + p["b2"], 0.0)
    h = jnp.maximum(mm(h, p["w3"]) + p["b3"], 0.0)
    return mm(h, p["w4"]) + p["b4"]


if __name__ == "__main__":
    # Small shapes consistent with the module's forward: (batch, input_dimension)
    batch = 128                 # module's default batch_size
    input_dimension = 64
    hidden_layer_width = 256    # small stand-in for the default 2000
    latent_dimension = 10       # encoder output = 2 * latent_dimension = 20

    key = jax.random.PRNGKey(0)
    k_x, k_p = jax.random.split(key)
    x = jax.random.normal(k_x, (batch, input_dimension), jnp.float32)
    params = init_params(k_p, input_dimension, hidden_layer_width,
                         latent_dimension)

    # block_b=64 -> grid=(2,): exercises the pipelined / megacore-able path.
    out = clinical_vae_forward(x, params, block_b=64)
    out = jax.block_until_ready(out)

    ref = reference_forward(x, params)
    assert out.shape == (batch, 2 * latent_dimension)
    assert jnp.allclose(out, ref, atol=2e-2, rtol=2e-2), (
        float(jnp.max(jnp.abs(out - ref))))

    print("KERNEL_OK")
</pallas_src>

<mosaic_0001>
module attributes {stable_mosaic.version = 11 : i64} {
  func.func @encoder_kernel(%arg0: i32, %arg1: memref<64x128xbf16, #tpu.memory_space<vmem>>, %arg2: memref<128x256xbf16, #tpu.memory_space<vmem>>, %arg3: memref<1x256xf32, #tpu.memory_space<vmem>>, %arg4: memref<256x512xbf16, #tpu.memory_space<vmem>>, %arg5: memref<1x512xf32, #tpu.memory_space<vmem>>, %arg6: memref<512x128xbf16, #tpu.memory_space<vmem>>, %arg7: memref<1x128xf32, #tpu.memory_space<vmem>>, %arg8: memref<128x128xbf16, #tpu.memory_space<vmem>>, %arg9: memref<1x128xf32, #tpu.memory_space<vmem>>, %arg10: memref<64x128xf32, #tpu.memory_space<vmem>>) attributes {dimension_semantics = [#tpu.dimension_semantics<parallel>], iteration_bounds = array<i64: 2>, scalar_prefetch = 0 : i64, scratch_operands = 0 : i64, tpu.core_type = #tpu.core_type<tc>, window_params = [{transform_indices = @transform_0, window_bounds = array<i64: 64, 128>}, {pipeline_mode = #tpu.pipeline_mode<synchronous>, transform_indices = @transform_1, window_bounds = array<i64: 128, 256>}, {pipeline_mode = #tpu.pipeline_mode<synchronous>, transform_indices = @transform_2, window_bounds = array<i64: 1, 256>}, {pipeline_mode = #tpu.pipeline_mode<synchronous>, transform_indices = @transform_3, window_bounds = array<i64: 256, 512>}, {pipeline_mode = #tpu.pipeline_mode<synchronous>, transform_indices = @transform_4, window_bounds = array<i64: 1, 512>}, {pipeline_mode = #tpu.pipeline_mode<synchronous>, transform_indices = @transform_5, window_bounds = array<i64: 512, 128>}, {pipeline_mode = #tpu.pipeline_mode<synchronous>, transform_indices = @transform_6, window_bounds = array<i64: 1, 128>}, {pipeline_mode = #tpu.pipeline_mode<synchronous>, transform_indices = @transform_7, window_bounds = array<i64: 128, 128>}, {pipeline_mode = #tpu.pipeline_mode<synchronous>, transform_indices = @transform_8, window_bounds = array<i64: 1, 128>}, {transform_indices = @transform_9, window_bounds = array<i64: 64, 128>}]} {
    %c0 = arith.constant 0 : index
    %c0_0 = arith.constant 0 : index
    %0 = vector.load %arg1[%c0, %c0_0] : memref<64x128xbf16, #tpu.memory_space<vmem>>, vector<64x128xbf16>
    %c0_1 = arith.constant 0 : index
    %c0_2 = arith.constant 0 : index
    %1 = vector.load %arg2[%c0_1, %c0_2] : memref<128x256xbf16, #tpu.memory_space<vmem>>, vector<128x256xbf16>
    %cst = arith.constant dense<0.000000e+00> : vector<64x256xf32>
    %2 = tpu.matmul %0, %1, %cst {dimension_numbers = #tpu.dot_dimension_numbers<[1], [0], [0], [1], [0, 0, 1, 1], [], []>} : vector<64x128xbf16>, vector<128x256xbf16>, vector<64x256xf32> -> vector<64x256xf32>
    %c0_3 = arith.constant 0 : index
    %c0_4 = arith.constant 0 : index
    %3 = vector.load %arg3[%c0_3, %c0_4] : memref<1x256xf32, #tpu.memory_space<vmem>>, vector<1x256xf32>
    %4 = vector.broadcast %3 : vector<1x256xf32> to vector<64x256xf32>
    %5 = arith.addf %2, %4 : vector<64x256xf32>
    %cst_5 = arith.constant 0.000000e+00 : f32
    %6 = vector.broadcast %cst_5 : f32 to vector<64x256xf32>
    %7 = arith.maximumf %5, %6 : vector<64x256xf32>
    %8 = arith.truncf %7 : vector<64x256xf32> to vector<64x256xbf16>
    %c0_6 = arith.constant 0 : index
    %c0_7 = arith.constant 0 : index
    %9 = vector.load %arg4[%c0_6, %c0_7] : memref<256x512xbf16, #tpu.memory_space<vmem>>, vector<256x512xbf16>
    %cst_8 = arith.constant dense<0.000000e+00> : vector<64x512xf32>
    %10 = tpu.matmul %8, %9, %cst_8 {dimension_numbers = #tpu.dot_dimension_numbers<[1], [0], [0], [1], [0, 0, 1, 1], [], []>} : vector<64x256xbf16>, vector<256x512xbf16>, vector<64x512xf32> -> vector<64x512xf32>
    %c0_9 = arith.constant 0 : index
    %c0_10 = arith.constant 0 : index
    %11 = vector.load %arg5[%c0_9, %c0_10] : memref<1x512xf32, #tpu.memory_space<vmem>>, vector<1x512xf32>
    %12 = vector.broadcast %11 : vector<1x512xf32> to vector<64x512xf32>
    %13 = arith.addf %10, %12 : vector<64x512xf32>
    %cst_11 = arith.constant 0.000000e+00 : f32
    %14 = vector.broadcast %cst_11 : f32 to vector<64x512xf32>
    %15 = arith.maximumf %13, %14 : vector<64x512xf32>
    %16 = arith.truncf %15 : vector<64x512xf32> to vector<64x512xbf16>
    %c0_12 = arith.constant 0 : index
    %c0_13 = arith.constant 0 : index
    %17 = vector.load %arg6[%c0_12, %c0_13] : memref<512x128xbf16, #tpu.memory_space<vmem>>, vector<512x128xbf16>
    %cst_14 = arith.constant dense<0.000000e+00> : vector<64x128xf32>
    %18 = tpu.matmul %16, %17, %cst_14 {dimension_numbers = #tpu.dot_dimension_numbers<[1], [0], [0], [1], [0, 0, 1, 1], [], []>} : vector<64x512xbf16>, vector<512x128xbf16>, vector<64x128xf32> -> vector<64x128xf32>
    %c0_15 = arith.constant 0 : index
    %c0_16 = arith.constant 0 : index
    %19 = vector.load %arg7[%c0_15, %c0_16] : memref<1x128xf32, #tpu.memory_space<vmem>>, vector<1x128xf32>
    %20 = vector.broadcast %19 : vector<1x128xf32> to vector<64x128xf32>
    %21 = arith.addf %18, %20 : vector<64x128xf32>
    %cst_17 = arith.constant 0.000000e+00 : f32
    %22 = vector.broadcast %cst_17 : f32 to vector<64x128xf32>
    %23 = arith.maximumf %21, %22 : vector<64x128xf32>
    %24 = arith.truncf %23 : vector<64x128xf32> to vector<64x128xbf16>
    %c0_18 = arith.constant 0 : index
    %c0_19 = arith.constant 0 : index
    %25 = vector.load %arg8[%c0_18, %c0_19] : memref<128x128xbf16, #tpu.memory_space<vmem>>, vector<128x128xbf16>
    %cst_20 = arith.constant dense<0.000000e+00> : vector<64x128xf32>
    %26 = tpu.matmul %24, %25, %cst_20 {dimension_numbers = #tpu.dot_dimension_numbers<[1], [0], [0], [1], [0, 0, 1, 1], [], []>} : vector<64x128xbf16>, vector<128x128xbf16>, vector<64x128xf32> -> vector<64x128xf32>
    %c0_21 = arith.constant 0 : index
    %c0_22 = arith.constant 0 : index
    %27 = vector.load %arg9[%c0_21, %c0_22] : memref<1x128xf32, #tpu.memory_space<vmem>>, vector<1x128xf32>
    %28 = vector.broadcast %27 : vector<1x128xf32> to vector<64x128xf32>
    %29 = arith.addf %26, %28 : vector<64x128xf32>
    %c0_23 = arith.constant 0 : index
    %c0_24 = arith.constant 0 : index
    %30 = vector.load %arg10[%c0_23, %c0_24] : memref<64x128xf32, #tpu.memory_space<vmem>>, vector<64x128xf32>
    tpu.vector_store %arg10[%c0_23, %c0_24], %29 {strides = array<i32>} : memref<64x128xf32, #tpu.memory_space<vmem>>, vector<64x128xf32>,
    return
  }
  func.func @transform_0(%arg0: i32) -> (i32, i32) {
    %c0_i32 = arith.constant 0 : i32
    %c0_i32_0 = arith.constant 0 : i32
    return %arg0, %c0_i32 : i32, i32
  }
  func.func @transform_1(%arg0: i32) -> (i32, i32) {
    %c0_i32 = arith.constant 0 : i32
    %c0_i32_0 = arith.constant 0 : i32
    %c0_i32_1 = arith.constant 0 : i32
    return %c0_i32, %c0_i32_0 : i32, i32
  }
  func.func @transform_2(%arg0: i32) -> (i32, i32) {
    %c0_i32 = arith.constant 0 : i32
    %c0_i32_0 = arith.constant 0 : i32
    %c0_i32_1 = arith.constant 0 : i32
    return %c0_i32, %c0_i32_0 : i32, i32
  }
  func.func @transform_3(%arg0: i32) -> (i32, i32) {
    %c0_i32 = arith.constant 0 : i32
    %c0_i32_0 = arith.constant 0 : i32
    %c0_i32_1 = arith.constant 0 : i32
    return %c0_i32, %c0_i32_0 : i32, i32
  }
  func.func @transform_4(%arg0: i32) -> (i32, i32) {
    %c0_i32 = arith.constant 0 : i32
    %c0_i32_0 = arith.constant 0 : i32
    %c0_i32_1 = arith.constant 0 : i32
    return %c0_i32, %c0_i32_0 : i32, i32
  }
  func.func @transform_5(%arg0: i32) -> (i32, i32) {
    %c0_i32 = arith.constant 0 : i32
    %c0_i32_0 = arith.constant 0 : i32
    %c0_i32_1 = arith.constant 0 : i32
    return %c0_i32, %c0_i32_0 : i32, i32
  }
  func.func @transform_6(%arg0: i32) -> (i32, i32) {
    %c0_i32 = arith.constant 0 : i32
    %c0_i32_0 = arith.constant 0 : i32
    %c0_i32_1 = arith.constant 0 : i32
    return %c0_i32, %c0_i32_0 : i32, i32
  }
  func.func @transform_7(%arg0: i32) -> (i32, i32) {
    %c0_i32 = arith.constant 0 : i32
    %c0_i32_0 = arith.constant 0 : i32
    %c0_i32_1 = arith.constant 0 : i32
    return %c0_i32, %c0_i32_0 : i32, i32
  }
  func.func @transform_8(%arg0: i32) -> (i32, i32) {
    %c0_i32 = arith.constant 0 : i32
    %c0_i32_0 = arith.constant 0 : i32
    %c0_i32_1 = arith.constant 0 : i32
    return %c0_i32, %c0_i32_0 : i32, i32
  }
  func.func @transform_9(%arg0: i32) -> (i32, i32) {
    %c0_i32 = arith.constant 0 : i32
    %c0_i32_0 = arith.constant 0 : i32
    return %arg0, %c0_i32 : i32, i32
  }
}

</mosaic_0001>

<llo_original>
// kernel: tpu_custom_call.1
$region0: #{tpu_custom_call.1}
  #allocation0 [shape = 'u32[]', space=smem, size = 0x4, offset = 0x4, fixed_abs, tag = 'smem constant byte address 0x4 - core index']
  #allocation1 [shape = 'u32[72,128]{1,0:T(1,128)}', space=vmem, size = 0x9000, scoped, tag = 'internal scratch']
  %s0 = inlined_call_operand.hbm [shape: bf16[128,128], index: 0, kind: input, shape index: {}]
  %s1 = inlined_call_operand.hbm [shape: bf16[128,256], index: 1, kind: input, shape index: {}]
  %s2 = inlined_call_operand.hbm [shape: f32[1,256], index: 2, kind: input, shape index: {}]
  %s3 = inlined_call_operand.hbm [shape: bf16[256,512], index: 3, kind: input, shape index: {}]
  %s4 = inlined_call_operand.hbm [shape: f32[1,512], index: 4, kind: input, shape index: {}]
  %s5 = inlined_call_operand.hbm [shape: bf16[512,128], index: 5, kind: input, shape index: {}]
  %s6 = inlined_call_operand.vmem [shape: f32[1,128], index: 6, kind: input, shape index: {}]
  %s7 = inlined_call_operand.hbm [shape: bf16[128,128], index: 7, kind: input, shape index: {}]
  %s8 = inlined_call_operand.vmem [shape: f32[1,128], index: 8, kind: input, shape index: {}]
  %s9 = inlined_call_operand.hbm [shape: f32[128,128], index: 9, kind: output, shape index: {}]
  %s10 = sld [smem:[#allocation0]]
  $region97: #{tpu_custom_call.1} parent=0
    _
  %s12 = ssub.s32 1, %s10
  %s13 = scalar_select 0, %s12, %s10
  $region1: #{tpu_custom_call.1} parent=0
    #allocation2 [shape = 'u8[32768]{0}', space=vmem, size = 0x8000, scoped, tag = 'input window, operand 0']
    #allocation3 [shape = 's32[2]{0}', space=sflag, size = 0x8, scoped, tag = 'scoped memory for tpu_custom_call.1']
    #allocation4 [shape = 's32[2]{0}', space=sflag, size = 0x8, scoped, tag = 'scoped memory for tpu_custom_call.1']
    #allocation5 [shape = 'u8[65536]{0}', space=vmem, size = 0x10000, scoped, tag = 'input window, operand 1, single buffered']
    #allocation6 [shape = 's32[1]{0}', space=sflag, size = 0x4, scoped, tag = 'scoped memory for tpu_custom_call.1']
    #allocation7 [shape = 'u8[1024]{0}', space=vmem, size = 0x400, scoped, tag = 'input window, operand 2, single buffered']
    #allocation8 [shape = 'u8[262144]{0}', space=vmem, size = 0x40000, scoped, tag = 'input window, operand 3, single buffered']
    #allocation9 [shape = 's32[1]{0}', space=sflag, size = 0x4, scoped, tag = 'scoped memory for tpu_custom_call.1']
    #allocation10 [shape = 'u8[2048]{0}', space=vmem, size = 0x800, scoped, tag = 'input window, operand 4, single buffered']
    #allocation11 [shape = 'u8[131072]{0}', space=vmem, size = 0x20000, scoped, tag = 'input window, operand 5, single buffered']
    #allocation12 [shape = 's32[1]{0}', space=sflag, size = 0x4, scoped, tag = 'scoped memory for tpu_custom_call.1']
    #allocation13 [shape = 'u8[32768]{0}', space=vmem, size = 0x8000, scoped, tag = 'input window, operand 7, single buffered']
    #allocation14 [shape = 'u8[65536]{0}', space=vmem, size = 0x10000, scoped, tag = 'output window, operand 0']
    %14 = vsyncpa [#allocation3], 0
    %s15 = scalar_lea.sflag [#allocation3], 1
    %16 = vsyncpa %s15, 0
    %17 = vsyncpa [#allocation6], 0
    %18 = vsyncpa [#allocation9], 0
    %19 = vsyncpa [#allocation12], 0
    %20 = vsyncpa [#allocation4], 0
    %s21 = scalar_lea.sflag [#allocation4], 1
    %22 = vsyncpa %s21, 0
    loop: start=0, step=1, limit=4
    $region2: #{tpu_custom_call.1} parent=1 // loop_pre_header
      _
    $region3: #{tpu_custom_call.1} parent=1 // loop_header
      %s24 = sphi 0, %s28
      %p25 = scmp.ge.s32.totalorder %s24, 4
      %s34 = sphi 0, %s36
      %s37 = sphi 0, %s34
      %s38 = sphi 0, %s37
      %s54 = sphi 0, %s38
      %s58 = sphi 0, %s58
      %s60 = sphi 0, %s58
      %s61 = sphi 0, %s60
      %s75 = sphi 0, %s61
      %s79 = sphi 0, %s79
      %s81 = sphi 0, %s79
      %s82 = sphi 0, %s81
      %s96 = sphi 0, %s82
      %s100 = sphi 0, %s100
      %s102 = sphi 0, %s100
      %s103 = sphi 0, %s102
      %s117 = sphi 0, %s103
      %s121 = sphi 0, %s121
      %s123 = sphi 0, %s121
      %s124 = sphi 0, %s123
      %s138 = sphi 0, %s124
      %s142 = sphi 0, %s142
      %s144 = sphi 0, %s142
      %s145 = sphi 0, %s144
      %s159 = sphi 0, %s145
      %s163 = sphi 0, %s163
      %s165 = sphi 0, %s163
      %s166 = sphi 0, %s165
      %s180 = sphi 0, %s166
      %s184 = sphi 0, %s184
      %s186 = sphi 0, %s184
      %s187 = sphi 0, %s186
      %s201 = sphi 0, %s187
      %s205 = sphi 0, %s205
      %s207 = sphi 0, %s205
      %s208 = sphi 0, %s207
      %s222 = sphi 0, %s208
      %s228 = sphi 0, %s230
      %s231 = sphi 0, %s228
      %s232 = sphi 0, %s231
      %s248 = sphi 0, %s232
    $region4: #{tpu_custom_call.1} parent=1 // loop_header_branch
      %27 = sbr.rel (%p25) target = $region8
    $region5: #{tpu_custom_call.1} parent=1 // loop_body
      %s29 = ssub.s32 %s24, 1
      %s30 = ssub.s32 %s24, 2
      %s31 = sadd.s32 %s24, 1
      %s32 = ssub.s32 %s24, %s31
      %p33 = scmp.eq.s32.totalorder %s32, 0
      %s35 = sadd.s32 %s34, 1
      %s36 = scalar_select %p33, %s34, %s35
      %p39 = pneg %p33
      %p40 = scmp.eq.s32.totalorder %s24, 1
      %p41 = por %p39, %p40
      %p42 = scmp.ne.s32.totalorder %s34, %s37
      %p43 = scmp.eq.s32.totalorder %s24, 0
      %p44 = por %p42, %p43
      %p45 = scmp.ne.s32.totalorder %s34, %s37
      %p46 = scmp.eq.s32.totalorder %s29, 1
      %p47 = por %p45, %p46
      %p48 = scmp.ne.s32.totalorder %s37, %s38
      %p49 = scmp.eq.s32.totalorder %s29, 0
      %p50 = por %p48, %p49
      %p51 = scmp.ne.s32.totalorder %s37, %s38
      %p52 = scmp.eq.s32.totalorder %s30, 1
      %p53 = por %p51, %p52
      %p55 = scmp.ne.s32.totalorder %s38, %s54
      %p56 = scmp.eq.s32.totalorder %s30, 0
      %p57 = por %p55, %p56
      %s59 = sadd.s32 %s58, 1
      %p62 = scmp.eq.s32.totalorder %s24, 1
      %p63 = scmp.ne.s32.totalorder %s58, %s60
      %p64 = scmp.eq.s32.totalorder %s24, 0
      %p65 = por %p63, %p64
      %p66 = scmp.ne.s32.totalorder %s58, %s60
      %p67 = scmp.eq.s32.totalorder %s29, 1
      %p68 = por %p66, %p67
      %p69 = scmp.ne.s32.totalorder %s60, %s61
      %p70 = scmp.eq.s32.totalorder %s29, 0
      %p71 = por %p69, %p70
      %p72 = scmp.ne.s32.totalorder %s60, %s61
      %p73 = scmp.eq.s32.totalorder %s30, 1
      %p74 = por %p72, %p73
      %p76 = scmp.ne.s32.totalorder %s61, %s75
      %p77 = scmp.eq.s32.totalorder %s30, 0
      %p78 = por %p76, %p77
      %s80 = sadd.s32 %s79, 1
      %p83 = scmp.eq.s32.totalorder %s24, 1
      %p84 = scmp.ne.s32.totalorder %s79, %s81
      %p85 = scmp.eq.s32.totalorder %s24, 0
      %p86 = por %p84, %p85
      %p87 = scmp.ne.s32.totalorder %s79, %s81
      %p88 = scmp.eq.s32.totalorder %s29, 1
      %p89 = por %p87, %p88
      %p90 = scmp.ne.s32.totalorder %s81, %s82
      %p91 = scmp.eq.s32.totalorder %s29, 0
      %p92 = por %p90, %p91
      %p93 = scmp.ne.s32.totalorder %s81, %s82
      %p94 = scmp.eq.s32.totalorder %s30, 1
      %p95 = por %p93, %p94
      %p97 = scmp.ne.s32.totalorder %s82, %s96
      %p98 = scmp.eq.s32.totalorder %s30, 0
      %p99 = por %p97, %p98
      %s101 = sadd.s32 %s100, 1
      %p104 = scmp.eq.s32.totalorder %s24, 1
      %p105 = scmp.ne.s32.totalorder %s100, %s102
      %p106 = scmp.eq.s32.totalorder %s24, 0
      %p107 = por %p105, %p106
      %p108 = scmp.ne.s32.totalorder %s100, %s102
      %p109 = scmp.eq.s32.totalorder %s29, 1
      %p110 = por %p108, %p109
      %p111 = scmp.ne.s32.totalorder %s102, %s103
      %p112 = scmp.eq.s32.totalorder %s29, 0
      %p113 = por %p111, %p112
      %p114 = scmp.ne.s32.totalorder %s102, %s103
      %p115 = scmp.eq.s32.totalorder %s30, 1
      %p116 = por %p114, %p115
      %p118 = scmp.ne.s32.totalorder %s103, %s117
      %p119 = scmp.eq.s32.totalorder %s30, 0
      %p120 = por %p118, %p119
      %s122 = sadd.s32 %s121, 1
      %p125 = scmp.eq.s32.totalorder %s24, 1
      %p126 = scmp.ne.s32.totalorder %s121, %s123
      %p127 = scmp.eq.s32.totalorder %s24, 0
      %p128 = por %p126, %p127
      %p129 = scmp.ne.s32.totalorder %s121, %s123
      %p130 = scmp.eq.s32.totalorder %s29, 1
      %p131 = por %p129, %p130
      %p132 = scmp.ne.s32.totalorder %s123, %s124
      %p133 = scmp.eq.s32.totalorder %s29, 0
      %p134 = por %p132, %p133
      %p135 = scmp.ne.s32.totalorder %s123, %s124
      %p136 = scmp.eq.s32.totalorder %s30, 1
      %p137 = por %p135, %p136
      %p139 = scmp.ne.s32.totalorder %s124, %s138
      %p140 = scmp.eq.s32.totalorder %s30, 0
      %p141 = por %p139, %p140
      %s143 = sadd.s32 %s142, 1
      %p146 = scmp.eq.s32.totalorder %s24, 1
      %p147 = scmp.ne.s32.totalorder %s142, %s144
      %p148 = scmp.eq.s32.totalorder %s24, 0
      %p149 = por %p147, %p148
      %p150 = scmp.ne.s32.totalorder %s142, %s144
      %p151 = scmp.eq.s32.totalorder %s29, 1
      %p152 = por %p150, %p151
      %p153 = scmp.ne.s32.totalorder %s144, %s145
      %p154 = scmp.eq.s32.totalorder %s29, 0
      %p155 = por %p153, %p154
      %p156 = scmp.ne.s32.totalorder %s144, %s145
      %p157 = scmp.eq.s32.totalorder %s30, 1
      %p158 = por %p156, %p157
      %p160 = scmp.ne.s32.totalorder %s145, %s159
      %p161 = scmp.eq.s32.totalorder %s30, 0
      %p162 = por %p160, %p161
      %s164 = sadd.s32 %s163, 1
      %p167 = scmp.eq.s32.totalorder %s24, 1
      %p168 = scmp.ne.s32.totalorder %s163, %s165
      %p169 = scmp.eq.s32.totalorder %s24, 0
      %p170 = por %p168, %p169
      %p171 = scmp.ne.s32.totalorder %s163, %s165
      %p172 = scmp.eq.s32.totalorder %s29, 1
      %p173 = por %p171, %p172
      %p174 = scmp.ne.s32.totalorder %s165, %s166
      %p175 = scmp.eq.s32.totalorder %s29, 0
      %p176 = por %p174, %p175
      %p177 = scmp.ne.s32.totalorder %s165, %s166
      %p178 = scmp.eq.s32.totalorder %s30, 1
      %p179 = por %p177, %p178
      %p181 = scmp.ne.s32.totalorder %s166, %s180
      %p182 = scmp.eq.s32.totalorder %s30, 0
      %p183 = por %p181, %p182
      %s185 = sadd.s32 %s184, 1
      %p188 = scmp.eq.s32.totalorder %s24, 1
      %p189 = scmp.ne.s32.totalorder %s184, %s186
      %p190 = scmp.eq.s32.totalorder %s24, 0
      %p191 = por %p189, %p190
      %p192 = scmp.ne.s32.totalorder %s184, %s186
      %p193 = scmp.eq.s32.totalorder %s29, 1
      %p194 = por %p192, %p193
      %p195 = scmp.ne.s32.totalorder %s186, %s187
      %p196 = scmp.eq.s32.totalorder %s29, 0
      %p197 = por %p195, %p196
      %p198 = scmp.ne.s32.totalorder %s186, %s187
      %p199 = scmp.eq.s32.totalorder %s30, 1
      %p200 = por %p198, %p199
      %p202 = scmp.ne.s32.totalorder %s187, %s201
      %p203 = scmp.eq.s32.totalorder %s30, 0
      %p204 = por %p202, %p203
      %s206 = sadd.s32 %s205, 1
      %p209 = scmp.eq.s32.totalorder %s24, 1
      %p210 = scmp.ne.s32.totalorder %s205, %s207
      %p211 = scmp.eq.s32.totalorder %s24, 0
      %p212 = por %p210, %p211
      %p213 = scmp.ne.s32.totalorder %s205, %s207
      %p214 = scmp.eq.s32.totalorder %s29, 1
      %p215 = por %p213, %p214
      %p216 = scmp.ne.s32.totalorder %s207, %s208
      %p217 = scmp.eq.s32.totalorder %s29, 0
      %p218 = por %p216, %p217
      %p219 = scmp.ne.s32.totalorder %s207, %s208
      %p220 = scmp.eq.s32.totalorder %s30, 1
      %p221 = por %p219, %p220
      %p223 = scmp.ne.s32.totalorder %s208, %s222
      %p224 = scmp.eq.s32.totalorder %s30, 0
      %p225 = por %p223, %p224
      %s226 = ssub.s32 %s24, %s31
      %p227 = scmp.eq.s32.totalorder %s226, 0
      %s229 = sadd.s32 %s228, 1
      %s230 = scalar_select %p227, %s228, %s229
      %p233 = pneg %p227
      %p234 = scmp.eq.s32.totalorder %s24, 1
      %p235 = por %p233, %p234
      %p236 = scmp.ne.s32.totalorder %s228, %s231
      %p237 = scmp.eq.s32.totalorder %s24, 0
      %p238 = por %p236, %p237
      %p239 = scmp.ne.s32.totalorder %s228, %s231
      %p240 = scmp.eq.s32.totalorder %s29, 1
      %p241 = por %p239, %p240
      %p242 = scmp.ne.s32.totalorder %s231, %s232
      %p243 = scmp.eq.s32.totalorder %s29, 0
      %p244 = por %p242, %p243
      %p245 = scmp.ne.s32.totalorder %s231, %s232
      %p246 = scmp.eq.s32.totalorder %s30, 1
      %p247 = por %p245, %p246
      %p249 = scmp.ne.s32.totalorder %s232, %s248
      %p250 = scmp.eq.s32.totalorder %s30, 0
      %p251 = por %p249, %p250
      %p252 = scmp.le.s32.totalorder 1, %s24
      %p253 = scmp.lt.s32.totalorder %s24, 3
      %p254 = pnand %p252, %p253
      %p255 = pneg %p254
      // Predicated region
      $region9: #{tpu_custom_call.1} parent=5 // pred_check
        _
      $region10: #{tpu_custom_call.1} parent=5 // pred_check_branch
        %257 = sbr.rel (%p254) target = $region12
      $region11: #{tpu_custom_call.1} parent=5 // pred_region
        %s258 = ssub.s32 %s24, 1
        // Predicated region
        $region13: #{tpu_custom_call.1} parent=11 // pred_check
          %p259 = pneg %p71
        $region14: #{tpu_custom_call.1} parent=11 // pred_check_branch
          %261 = sbr.rel (%p259) target = $region16
        $region15: #{tpu_custom_call.1} parent=11 // pred_region
          %263 = vsyncadd [#allocation6], 0
          %s264 = sshll.u32 %s1, 4
          %s265 = int_to_ptr.hbm [resolvable:$true] %s264
          %s266 = sshll.u32 [#allocation5], 4
          %s267 = int_to_ptr.vmem [resolvable:$true] %s266
          %272 = dma.hbm_to_vmem [thread:$0]  %s265, 2048, %s267, [#allocation6], 128, 128, 8
        $region16: #{tpu_custom_call.1} parent=11 // pred_fallthru
          _
        // Predicated region
        $region17: #{tpu_custom_call.1} parent=11 // pred_check
          %p273 = pneg %p92
        $region18: #{tpu_custom_call.1} parent=11 // pred_check_branch
          %275 = sbr.rel (%p273) target = $region20
        $region19: #{tpu_custom_call.1} parent=11 // pred_region
          %277 = vsyncadd [#allocation6], 0
          %s279 = sshll.u32 %s2, 4
          %s280 = int_to_ptr.hbm [resolvable:$true] %s279
          %s281 = sshll.u32 [#allocation7], 4
          %s282 = int_to_ptr.vmem [resolvable:$true] %s281
          %284 = dma.hbm_to_vmem [thread:$0]  %s280, 32, %s282, [#allocation6]
        $region20: #{tpu_custom_call.1} parent=11 // pred_fallthru
          _
        // Predicated region
        $region21: #{tpu_custom_call.1} parent=11 // pred_check
          %p285 = pneg %p113
        $region22: #{tpu_custom_call.1} parent=11 // pred_check_branch
          %287 = sbr.rel (%p285) target = $region24
        $region23: #{tpu_custom_call.1} parent=11 // pred_region
          %289 = vsyncadd [#allocation9], 0
          %s290 = sshll.u32 %s3, 4
          %s291 = int_to_ptr.hbm [resolvable:$true] %s290
          %s292 = sshll.u32 [#allocation8], 4
          %s293 = int_to_ptr.vmem [resolvable:$true] %s292
          %298 = dma.hbm_to_vmem [thread:$0]  %s291, 8192, %s293, [#allocation9], 256, 256, 16
        $region24: #{tpu_custom_call.1} parent=11 // pred_fallthru
          _
        // Predicated region
        $region25: #{tpu_custom_call.1} parent=11 // pred_check
          %p299 = pneg %p134
        $region26: #{tpu_custom_call.1} parent=11 // pred_check_branch
          %301 = sbr.rel (%p299) target = $region28
        $region27: #{tpu_custom_call.1} parent=11 // pred_region
          %303 = vsyncadd [#allocation9], 0
          %s305 = sshll.u32 %s4, 4
          %s306 = int_to_ptr.hbm [resolvable:$true] %s305
          %s307 = sshll.u32 [#allocation10], 4
          %s308 = int_to_ptr.vmem [resolvable:$true] %s307
          %310 = dma.hbm_to_vmem [thread:$0]  %s306, 64, %s308, [#allocation9]
        $region28: #{tpu_custom_call.1} parent=11 // pred_fallthru
          _
        // Predicated region
        $region29: #{tpu_custom_call.1} parent=11 // pred_check
          %p311 = pneg %p155
        $region30: #{tpu_custom_call.1} parent=11 // pred_check_branch
          %313 = sbr.rel (%p311) target = $region32
        $region31: #{tpu_custom_call.1} parent=11 // pred_region
          %315 = vsyncadd [#allocation12], 0
          %s316 = sshll.u32 %s5, 4
          %s317 = int_to_ptr.hbm [resolvable:$true] %s316
          %s318 = sshll.u32 [#allocation11], 4
          %s319 = int_to_ptr.vmem [resolvable:$true] %s318
          %324 = dma.hbm_to_vmem [thread:$0]  %s317, 4096, %s319, [#allocation12], 64, 64, 4
        $region32: #{tpu_custom_call.1} parent=11 // pred_fallthru
          _
        // Predicated region
        $region33: #{tpu_custom_call.1} parent=11 // pred_check
          %p325 = pneg %p176
        $region34: #{tpu_custom_call.1} parent=11 // pred_check_branch
          %327 = sbr.rel (%p325) target = $region36
        $region35: #{tpu_custom_call.1} parent=11 // pred_region
          _
        $region36: #{tpu_custom_call.1} parent=11 // pred_fallthru
          _
        // Predicated region
        $region37: #{tpu_custom_call.1} parent=11 // pred_check
          %p328 = pneg %p197
        $region38: #{tpu_custom_call.1} parent=11 // pred_check_branch
          %330 = sbr.rel (%p328) target = $region40
        $region39: #{tpu_custom_call.1} parent=11 // pred_region
          %332 = vsyncadd [#allocation12], 0
          %s333 = sshll.u32 %s7, 4
          %s334 = int_to_ptr.hbm [resolvable:$true] %s333
          %s335 = sshll.u32 [#allocation13], 4
          %s336 = int_to_ptr.vmem [resolvable:$true] %s335
          %341 = dma.hbm_to_vmem [thread:$0]  %s334, 1024, %s336, [#allocation12], 64, 64, 4
        $region40: #{tpu_custom_call.1} parent=11 // pred_fallthru
          _
        // Predicated region
        $region41: #{tpu_custom_call.1} parent=11 // pred_check
          %p342 = pneg %p218
        $region42: #{tpu_custom_call.1} parent=11 // pred_check_branch
          %344 = sbr.rel (%p342) target = $region44
        $region43: #{tpu_custom_call.1} parent=11 // pred_region
          _
        $region44: #{tpu_custom_call.1} parent=11 // pred_fallthru
          _
      $region12: #{tpu_custom_call.1} parent=5 // pred_fallthru
        _
      %p345 = scmp.lt.s32.totalorder %s24, 2
      // Predicated region
      $region45: #{tpu_custom_call.1} parent=5 // pred_check
        %p346 = pneg %p345
      $region46: #{tpu_custom_call.1} parent=5 // pred_check_branch
        %348 = sbr.rel (%p346) target = $region48
      $region47: #{tpu_custom_call.1} parent=5 // pred_region
        // Predicated region
        $region49: #{tpu_custom_call.1} parent=47 // pred_check
          %p349 = pneg %p44
        $region50: #{tpu_custom_call.1} parent=47 // pred_check_branch
          %351 = sbr.rel (%p349) target = $region52
        $region51: #{tpu_custom_call.1} parent=47 // pred_region
          %s352 = sand.u32 %s34, 1
          %s353 = scalar_lea.sflag [#allocation3], %s352
          %s354 = sand.u32 %s34, 1
          %s355 = smul.addr %s354, 32
          %s356 = scalar_lea.vmem [#allocation2], %s355
          %s357 = smul.u32 8, %s24
          %359 = vsyncadd %s353, 0
          %s360 = smul.addr %s357, 4
          %s361 = scalar_lea.hbm %s0, %s360
          %s362 = sshll.u32 %s361, 4
          %s363 = int_to_ptr.hbm [resolvable:$true] %s362
          %s364 = sshll.u32 %s356, 4
          %s365 = int_to_ptr.vmem [resolvable:$true] %s364
          %370 = dma.hbm_to_vmem [thread:$0]  %s363, 512, %s365, %s353, 64, 64, 4
        $region52: #{tpu_custom_call.1} parent=47 // pred_fallthru
          _
      $region48: #{tpu_custom_call.1} parent=5 // pred_fallthru
        _
      %p371 = scmp.le.s32.totalorder 1, %s24
      %p372 = scmp.lt.s32.totalorder %s24, 3
      %p373 = pnand %p371, %p372
      %p374 = pneg %p373
      // Predicated region
      $region53: #{tpu_custom_call.1} parent=5 // pred_check
        _
      $region54: #{tpu_custom_call.1} parent=5 // pred_check_branch
        %376 = sbr.rel (%p373) target = $region56
      $region55: #{tpu_custom_call.1} parent=5 // pred_region
        %s377 = ssub.s32 %s24, 1
        %s378 = sand.u32 %s37, 1
        %s379 = scalar_lea.sflag [#allocation3], %s378
        %s380 = sand.u32 %s37, 1
        %s381 = smul.addr %s380, 32
        %s382 = scalar_lea.vmem [#allocation2], %s381
        // Predicated region
        $region57: #{tpu_custom_call.1} parent=55 // pred_check
          %p383 = pneg %p50
        $region58: #{tpu_custom_call.1} parent=55 // pred_check_branch
          %385 = sbr.rel (%p383) target = $region60
        $region59: #{tpu_custom_call.1} parent=55 // pred_region
          %387 = dma.done %s379, 512
        $region60: #{tpu_custom_call.1} parent=55 // pred_fallthru
          _
        // Predicated region
        $region61: #{tpu_custom_call.1} parent=55 // pred_check
          %p388 = pneg %p71
        $region62: #{tpu_custom_call.1} parent=55 // pred_check_branch
          %390 = sbr.rel (%p388) target = $region64
        $region63: #{tpu_custom_call.1} parent=55 // pred_region
          %392 = dma.done [#allocation6], 2048
        $region64: #{tpu_custom_call.1} parent=55 // pred_fallthru
          _
        // Predicated region
        $region65: #{tpu_custom_call.1} parent=55 // pred_check
          %p393 = pneg %p92
        $region66: #{tpu_custom_call.1} parent=55 // pred_check_branch
          %395 = sbr.rel (%p393) target = $region68
        $region67: #{tpu_custom_call.1} parent=55 // pred_region
          %397 = dma.done [#allocation6], 32
        $region68: #{tpu_custom_call.1} parent=55 // pred_fallthru
          _
        // Predicated region
        $region69: #{tpu_custom_call.1} parent=55 // pred_check
          %p398 = pneg %p113
        $region70: #{tpu_custom_call.1} parent=55 // pred_check_branch
          %400 = sbr.rel (%p398) target = $region72
        $region71: #{tpu_custom_call.1} parent=55 // pred_region
          %402 = dma.done [#allocation9], 8192
        $region72: #{tpu_custom_call.1} parent=55 // pred_fallthru
          _
        // Predicated region
        $region73: #{tpu_custom_call.1} parent=55 // pred_check
          %p403 = pneg %p134
        $region74: #{tpu_custom_call.1} parent=55 // pred_check_branch
          %405 = sbr.rel (%p403) target = $region76
        $region75: #{tpu_custom_call.1} parent=55 // pred_region
          %407 = dma.done [#allocation9], 64
        $region76: #{tpu_custom_call.1} parent=55 // pred_fallthru
          _
        // Predicated region
        $region77: #{tpu_custom_call.1} parent=55 // pred_check
          %p408 = pneg %p155
        $region78: #{tpu_custom_call.1} parent=55 // pred_check_branch
          %410 = sbr.rel (%p408) target = $region80
        $region79: #{tpu_custom_call.1} parent=55 // pred_region
          %412 = dma.done [#allocation12], 4096
        $region80: #{tpu_custom_call.1} parent=55 // pred_fallthru
          _
        // Predicated region
        $region81: #{tpu_custom_call.1} parent=55 // pred_check
          %p413 = pneg %p197
        $region82: #{tpu_custom_call.1} parent=55 // pred_check_branch
          %415 = sbr.rel (%p413) target = $region84
        $region83: #{tpu_custom_call.1} parent=55 // pred_region
          %417 = dma.done [#allocation12], 1024
        $region84: #{tpu_custom_call.1} parent=55 // pred_fallthru
          _
        %s418 = sand.u32 %s37, 1
        %s419 = scalar_lea.sflag [#allocation3], %s418
        %s420 = sand.u32 %s37, 1
        %s421 = smul.addr %s420, 32
        %s422 = scalar_lea.vmem [#allocation2], %s421
        %p423 = pneg %p50
        %p424 = pneg %p47
        %p425 = pneg %p71
        %p426 = pneg %p68
        %p427 = pneg %p92
        %p428 = pneg %p89
        %p429 = pneg %p113
        %p430 = pneg %p110
        %p431 = pneg %p134
        %p432 = pneg %p131
        %p433 = pneg %p155
        %p434 = pneg %p152
        %p435 = pneg %p176
        %p436 = pneg %p173
        %p437 = pneg %p197
        %p438 = pneg %p194
        %p439 = pneg %p218
        %p440 = pneg %p215
        %p441 = pneg %p244
        %p442 = pneg %p241
        %s443 = sand.u32 %s231, 1
        %s444 = scalar_lea.sflag [#allocation4], %s443
        %s445 = sand.u32 %s231, 1
        %s446 = smul.addr %s445, 64
        %s447 = scalar_lea.vmem [#allocation14], %s446
        %s448 = smul.u32 8, %s29
        %s449 = smul.u32 8, %s29
        %v450 = vld [vmem:[%s382] sm:$0xf]
        %v451 = vld [vmem:[%s382 + $0x4] sm:$0xf]
        %v452 = vld [vmem:[%s382 + $0x8] sm:$0xf]
        %v453 = vld [vmem:[%s382 + $0xc] sm:$0xf]
        %v454 = vld [vmem:[%s382 + $0x10] sm:$0xf]
        %v455 = vld [vmem:[%s382 + $0x14] sm:$0xf]
        %v456 = vld [vmem:[%s382 + $0x18] sm:$0xf]
        %v457 = vld [vmem:[%s382 + $0x1c] sm:$0xf]
        %v458 = vld [vmem:[#allocation5] sm:$0xff]
        %v459 = vld [vmem:[#allocation5 + $0x8] sm:$0xff]
        %v460 = vld [vmem:[#allocation5 + $0x10] sm:$0xff]
        %v461 = vld [vmem:[#allocation5 + $0x18] sm:$0xff]
        %v462 = vld [vmem:[#allocation5 + $0x20] sm:$0xff]
        %v463 = vld [vmem:[#allocation5 + $0x28] sm:$0xff]
        %v464 = vld [vmem:[#allocation5 + $0x30] sm:$0xff]
        %v465 = vld [vmem:[#allocation5 + $0x38] sm:$0xff]
        %v466 = vld [vmem:[#allocation5 + $0x40] sm:$0xff]
        %v467 = vld [vmem:[#allocation5 + $0x48] sm:$0xff]
        %v468 = vld [vmem:[#allocation5 + $0x50] sm:$0xff]
        %v469 = vld [vmem:[#allocation5 + $0x58] sm:$0xff]
        %v470 = vld [vmem:[#allocation5 + $0x60] sm:$0xff]
        %v471 = vld [vmem:[#allocation5 + $0x68] sm:$0xff]
        %v472 = vld [vmem:[#allocation5 + $0x70] sm:$0xff]
        %v473 = vld [vmem:[#allocation5 + $0x78] sm:$0xff]
        %v474 = vld [vmem:[#allocation7] sm:$0x3]
        %v476 = vperm.slane %v474, 0
        %v477 = vperm.slane %v474, 1
        %v488 = vunpack.c.l.b16 %v450
        %v489 = vunpack.c.l.b16 %v451
        %v490 = vunpack.c.l.b16 %v452
        %v491 = vunpack.c.l.b16 %v453
        %v492 = vunpack.c.l.b16 %v454
        %v493 = vunpack.c.l.b16 %v455
        %v494 = vunpack.c.l.b16 %v456
        %v495 = vunpack.c.l.b16 %v457
        %v496 = vpack.c.b16 %v489, %v488
        %v497 = vpack.c.b16 %v491, %v490
        %v498 = vpack.c.b16 %v493, %v492
        %v499 = vpack.c.b16 %v495, %v494
        %v520 = vunpack.c.l.b16 %v458
        %v521 = vunpack.c.h.b16 %v458
        %v522 = vunpack.c.l.b16 %v459
        %v523 = vunpack.c.h.b16 %v459
        %v524 = vunpack.c.l.b16 %v460
        %v525 = vunpack.c.h.b16 %v460
        %v526 = vunpack.c.l.b16 %v461
        %v527 = vunpack.c.h.b16 %v461
        %v528 = vunpack.c.l.b16 %v462
        %v529 = vunpack.c.h.b16 %v462
        %v530 = vunpack.c.l.b16 %v463
        %v531 = vunpack.c.h.b16 %v463
        %v532 = vunpack.c.l.b16 %v464
        %v533 = vunpack.c.h.b16 %v464
        %v534 = vunpack.c.l.b16 %v465
        %v535 = vunpack.c.h.b16 %v465
        %v536 = vunpack.c.l.b16 %v466
        %v537 = vunpack.c.h.b16 %v466
        %v538 = vunpack.c.l.b16 %v467
        %v539 = vunpack.c.h.b16 %v467
        %v540 = vunpack.c.l.b16 %v468
        %v541 = vunpack.c.h.b16 %v468
        %v542 = vunpack.c.l.b16 %v469
        %v543 = vunpack.c.h.b16 %v469
        %v544 = vunpack.c.l.b16 %v470
        %v545 = vunpack.c.h.b16 %v470
        %v546 = vunpack.c.l.b16 %v471
        %v547 = vunpack.c.h.b16 %v471
        %v548 = vunpack.c.l.b16 %v472
        %v549 = vunpack.c.h.b16 %v472
        %v550 = vunpack.c.l.b16 %v473
        %v551 = vunpack.c.h.b16 %v473
        %v552 = vpack.c.b16 %v522, %v520
        %v553 = vpack.c.b16 %v523, %v521
        %v554 = vpack.c.b16 %v526, %v524
        %v555 = vpack.c.b16 %v527, %v525
        %v556 = vpack.c.b16 %v530, %v528
        %v557 = vpack.c.b16 %v531, %v529
        %v558 = vpack.c.b16 %v534, %v532
        %v559 = vpack.c.b16 %v535, %v533
        %v560 = vpack.c.b16 %v538, %v536
        %v561 = vpack.c.b16 %v539, %v537
        %v562 = vpack.c.b16 %v542, %v540
        %v563 = vpack.c.b16 %v543, %v541
        %v564 = vpack.c.b16 %v546, %v544
        %v565 = vpack.c.b16 %v547, %v545
        %v566 = vpack.c.b16 %v550, %v548
        %v567 = vpack.c.b16 %v551, %v549
        %584 = vmatpush.bf16.msra.mxu0 %v566
        %585 = vmatpush.bf16.msra.mxu0 %v564
        %586 = vmatpush.bf16.msra.mxu0 %v562
        %587 = vmatpush.bf16.msra.mxu0 %v560
        %588 = vmatpush.bf16.msra.mxu0 %v558
        %589 = vmatpush.bf16.msra.mxu0 %v556
        %590 = vmatpush.bf16.msra.mxu0 %v554
        %591 = vmatpush.bf16.msra.mxu0 %v552
        %592 = vmatmul.bf16.gmra.mxu0 %v496
        %v593 = vpop.f32.mrf.mxu0
        %v594 = vadd.f32 %v476, %v593
        %v595 = vpop.f32.mrf.mxu0
        %v596 = vadd.f32 %v476, %v595
        %597 = vmatmul.bf16.gmra.mxu0 %v497
        %v598 = vpop.f32.mrf.mxu0
        %v599 = vadd.f32 %v476, %v598
        %v600 = vpop.f32.mrf.mxu0
        %v601 = vadd.f32 %v476, %v600
        %602 = vmatmul.bf16.gmra.mxu0 %v498
        %v603 = vpop.f32.mrf.mxu0
        %v604 = vadd.f32 %v476, %v603
        %v605 = vpop.f32.mrf.mxu0
        %v606 = vadd.f32 %v476, %v605
        %607 = vmatmul.bf16.gmra.mxu0 %v499
        %v608 = vpop.f32.mrf.mxu0
        %v609 = vadd.f32 %v476, %v608
        %v610 = vpop.f32.mrf.mxu0
        %v611 = vadd.f32 %v476, %v610
        %612 = vdwg.mxu0
        %613 = vmatpush.bf16.msra.mxu0 %v567
        %614 = vmatpush.bf16.msra.mxu0 %v565
        %615 = vmatpush.bf16.msra.mxu0 %v563
        %616 = vmatpush.bf16.msra.mxu0 %v561
        %617 = vmatpush.bf16.msra.mxu0 %v559
        %618 = vmatpush.bf16.msra.mxu0 %v557
        %619 = vmatpush.bf16.msra.mxu0 %v555
        %620 = vmatpush.bf16.msra.mxu0 %v553
        %621 = vmatmul.bf16.gmra.mxu0 %v496
        %v622 = vpop.f32.mrf.mxu0
        %v623 = vadd.f32 %v477, %v622
        %v624 = vpop.f32.mrf.mxu0
        %v625 = vadd.f32 %v477, %v624
        %626 = vmatmul.bf16.gmra.mxu0 %v497
        %v627 = vpop.f32.mrf.mxu0
        %v628 = vadd.f32 %v477, %v627
        %v629 = vpop.f32.mrf.mxu0
        %v630 = vadd.f32 %v477, %v629
        %631 = vmatmul.bf16.gmra.mxu0 %v498
        %v632 = vpop.f32.mrf.mxu0
        %v633 = vadd.f32 %v477, %v632
        %v634 = vpop.f32.mrf.mxu0
        %v635 = vadd.f32 %v477, %v634
        %636 = vmatmul.bf16.gmra.mxu0 %v499
        %v637 = vpop.f32.mrf.mxu0
        %v638 = vadd.f32 %v477, %v637
        %v639 = vpop.f32.mrf.mxu0
        %v640 = vadd.f32 %v477, %v639
        %641 = vdwg.mxu0
        %v642 = vmax.f32 %v594, 0.0
        %v643 = vmax.f32 %v623, 0.0
        %v644 = vmax.f32 %v596, 0.0
        %v645 = vmax.f32 %v625, 0.0
        %v646 = vmax.f32 %v599, 0.0
        %v647 = vmax.f32 %v628, 0.0
        %v648 = vmax.f32 %v601, 0.0
        %v649 = vmax.f32 %v630, 0.0
        %v650 = vmax.f32 %v604, 0.0
        %v651 = vmax.f32 %v633, 0.0
        %v652 = vmax.f32 %v606, 0.0
        %v653 = vmax.f32 %v635, 0.0
        %v654 = vmax.f32 %v609, 0.0
        %v655 = vmax.f32 %v638, 0.0
        %v656 = vmax.f32 %v611, 0.0
        %v657 = vmax.f32 %v640, 0.0
        %v658 = vpack.c.bf16 %v644, %v642
        %v659 = vpack.c.bf16 %v645, %v643
        %v660 = vpack.c.bf16 %v648, %v646
        %v661 = vpack.c.bf16 %v649, %v647
        %v662 = vpack.c.bf16 %v652, %v650
        %v663 = vpack.c.bf16 %v653, %v651
        %v664 = vpack.c.bf16 %v656, %v654
        %v665 = vpack.c.bf16 %v657, %v655
        %v666 = vld [vmem:[#allocation8] sm:$0xff]
        %v667 = vld [vmem:[#allocation8 + $0x8] sm:$0xff]
        %v668 = vld [vmem:[#allocation8 + $0x10] sm:$0xff]
        %v669 = vld [vmem:[#allocation8 + $0x18] sm:$0xff]
        %v670 = vld [vmem:[#allocation8 + $0x20] sm:$0xff]
        %v671 = vld [vmem:[#allocation8 + $0x28] sm:$0xff]
        %v672 = vld [vmem:[#allocation8 + $0x30] sm:$0xff]
        %v673 = vld [vmem:[#allocation8 + $0x38] sm:$0xff]
        %v674 = vld [vmem:[#allocation8 + $0x40] sm:$0xff]
        %v675 = vld [vmem:[#allocation8 + $0x48] sm:$0xff]
        %v676 = vld [vmem:[#allocation8 + $0x50] sm:$0xff]
        %v677 = vld [vmem:[#allocation8 + $0x58] sm:$0xff]
        %v678 = vld [vmem:[#allocation8 + $0x60] sm:$0xff]
        %v679 = vld [vmem:[#allocation8 + $0x68] sm:$0xff]
        %v680 = vld [vmem:[#allocation8 + $0x70] sm:$0xff]
        %v681 = vld [vmem:[#allocation8 + $0x78] sm:$0xff]
        %v682 = vld [vmem:[#allocation8 + $0x80] sm:$0xff]
        %v683 = vld [vmem:[#allocation8 + $0x88] sm:$0xff]
        %v684 = vld [vmem:[#allocation8 + $0x90] sm:$0xff]
        %v685 = vld [vmem:[#allocation8 + $0x98] sm:$0xff]
        %v686 = vld [vmem:[#allocation8 + $0xa0] sm:$0xff]
        %v687 = vld [vmem:[#allocation8 + $0xa8] sm:$0xff]
        %v688 = vld [vmem:[#allocation8 + $0xb0] sm:$0xff]
        %v689 = vld [vmem:[#allocation8 + $0xb8] sm:$0xff]
        %v690 = vld [vmem:[#allocation8 + $0xc0] sm:$0xff]
        %v691 = vld [vmem:[#allocation8 + $0xc8] sm:$0xff]
        %v692 = vld [vmem:[#allocation8 + $0xd0] sm:$0xff]
        %v693 = vld [vmem:[#allocation8 + $0xd8] sm:$0xff]
        %v694 = vld [vmem:[#allocation8 + $0xe0] sm:$0xff]
        %v695 = vld [vmem:[#allocation8 + $0xe8] sm:$0xff]
        %v696 = vld [vmem:[#allocation8 + $0xf0] sm:$0xff]
        %v697 = vld [vmem:[#allocation8 + $0xf8] sm:$0xff]
        %v698 = vld [vmem:[#allocation8 + $0x100] sm:$0xff]
        %v699 = vld [vmem:[#allocation8 + $0x108] sm:$0xff]
        %v700 = vld [vmem:[#allocation8 + $0x110] sm:$0xff]
        %v701 = vld [vmem:[#allocation8 + $0x118] sm:$0xff]
        %v702 = vld [vmem:[#allocation8 + $0x120] sm:$0xff]
        %v703 = vld [vmem:[#allocation8 + $0x128] sm:$0xff]
        %v704 = vld [vmem:[#allocation8 + $0x130] sm:$0xff]
        %v705 = vld [vmem:[#allocation8 + $0x138] sm:$0xff]
        %v706 = vld [vmem:[#allocation8 + $0x140] sm:$0xff]
        %v707 = vld [vmem:[#allocation8 + $0x148] sm:$0xff]
        %v708 = vld [vmem:[#allocation8 + $0x150] sm:$0xff]
        %v709 = vld [vmem:[#allocation8 + $0x158] sm:$0xff]
        %v710 = vld [vmem:[#allocation8 + $0x160] sm:$0xff]
        %v711 = vld [vmem:[#allocation8 + $0x168] sm:$0xff]
        %v712 = vld [vmem:[#allocation8 + $0x170] sm:$0xff]
        %v713 = vld [vmem:[#allocation8 + $0x178] sm:$0xff]
        %v714 = vld [vmem:[#allocation8 + $0x180] sm:$0xff]
        %v715 = vld [vmem:[#allocation8 + $0x188] sm:$0xff]
        %v716 = vld [vmem:[#allocation8 + $0x190] sm:$0xff]
        %v717 = vld [vmem:[#allocation8 + $0x198] sm:$0xff]
        %v718 = vld [vmem:[#allocation8 + $0x1a0] sm:$0xff]
        %v719 = vld [vmem:[#allocation8 + $0x1a8] sm:$0xff]
        %v720 = vld [vmem:[#allocation8 + $0x1b0] sm:$0xff]
        %v721 = vld [vmem:[#allocation8 + $0x1b8] sm:$0xff]
        %v722 = vld [vmem:[#allocation8 + $0x1c0] sm:$0xff]
        %v723 = vld [vmem:[#allocation8 + $0x1c8] sm:$0xff]
        %v724 = vld [vmem:[#allocation8 + $0x1d0] sm:$0xff]
        %v725 = vld [vmem:[#allocation8 + $0x1d8] sm:$0xff]
        %v726 = vld [vmem:[#allocation8 + $0x1e0] sm:$0xff]
        %v727 = vld [vmem:[#allocation8 + $0x1e8] sm:$0xff]
        %v728 = vld [vmem:[#allocation8 + $0x1f0] sm:$0xff]
        %v729 = vld [vmem:[#allocation8 + $0x1f8] sm:$0xff]
        %v730 = vld [vmem:[#allocation10] sm:$0xf]
        %v732 = vperm.slane %v730, 0
        %v733 = vperm.slane %v730, 1
        %v734 = vperm.slane %v730, 2
        %v735 = vperm.slane %v730, 3
        %v804 = vunpack.c.l.b16 %v666
        %v805 = vunpack.c.h.b16 %v666
        %v806 = vunpack.c.l.b16 %v667
        %v807 = vunpack.c.h.b16 %v667
        %v808 = vunpack.c.l.b16 %v668
        %v809 = vunpack.c.h.b16 %v668
        %v810 = vunpack.c.l.b16 %v669
        %v811 = vunpack.c.h.b16 %v669
        %v812 = vunpack.c.l.b16 %v670
        %v813 = vunpack.c.h.b16 %v670
        %v814 = vunpack.c.l.b16 %v671
        %v815 = vunpack.c.h.b16 %v671
        %v816 = vunpack.c.l.b16 %v672
        %v817 = vunpack.c.h.b16 %v672
        %v818 = vunpack.c.l.b16 %v673
        %v819 = vunpack.c.h.b16 %v673
        %v820 = vunpack.c.l.b16 %v674
        %v821 = vunpack.c.h.b16 %v674
        %v822 = vunpack.c.l.b16 %v675
        %v823 = vunpack.c.h.b16 %v675
        %v824 = vunpack.c.l.b16 %v676
        %v825 = vunpack.c.h.b16 %v676
        %v826 = vunpack.c.l.b16 %v677
        %v827 = vunpack.c.h.b16 %v677
        %v828 = vunpack.c.l.b16 %v678
        %v829 = vunpack.c.h.b16 %v678
        %v830 = vunpack.c.l.b16 %v679
        %v831 = vunpack.c.h.b16 %v679
        %v832 = vunpack.c.l.b16 %v680
        %v833 = vunpack.c.h.b16 %v680
        %v834 = vunpack.c.l.b16 %v681
        %v835 = vunpack.c.h.b16 %v681
        %v836 = vunpack.c.l.b16 %v682
        %v837 = vunpack.c.h.b16 %v682
        %v838 = vunpack.c.l.b16 %v683
        %v839 = vunpack.c.h.b16 %v683
        %v840 = vunpack.c.l.b16 %v684
        %v841 = vunpack.c.h.b16 %v684
        %v842 = vunpack.c.l.b16 %v685
        %v843 = vunpack.c.h.b16 %v685
        %v844 = vunpack.c.l.b16 %v686
        %v845 = vunpack.c.h.b16 %v686
        %v846 = vunpack.c.l.b16 %v687
        %v847 = vunpack.c.h.b16 %v687
        %v848 = vunpack.c.l.b16 %v688
        %v849 = vunpack.c.h.b16 %v688
        %v850 = vunpack.c.l.b16 %v689
        %v851 = vunpack.c.h.b16 %v689
        %v852 = vunpack.c.l.b16 %v690
        %v853 = vunpack.c.h.b16 %v690
        %v854 = vunpack.c.l.b16 %v691
        %v855 = vunpack.c.h.b16 %v691
        %v856 = vunpack.c.l.b16 %v692
        %v857 = vunpack.c.h.b16 %v692
        %v858 = vunpack.c.l.b16 %v693
        %v859 = vunpack.c.h.b16 %v693
        %v860 = vunpack.c.l.b16 %v694
        %v861 = vunpack.c.h.b16 %v694
        %v862 = vunpack.c.l.b16 %v695
        %v863 = vunpack.c.h.b16 %v695
        %v864 = vunpack.c.l.b16 %v696
        %v865 = vunpack.c.h.b16 %v696
        %v866 = vunpack.c.l.b16 %v697
        %v867 = vunpack.c.h.b16 %v697
        %v868 = vunpack.c.l.b16 %v698
        %v869 = vunpack.c.h.b16 %v698
        %v870 = vunpack.c.l.b16 %v699
        %v871 = vunpack.c.h.b16 %v699
        %v872 = vunpack.c.l.b16 %v700
        %v873 = vunpack.c.h.b16 %v700
        %v874 = vunpack.c.l.b16 %v701
        %v875 = vunpack.c.h.b16 %v701
        %v876 = vunpack.c.l.b16 %v702
        %v877 = vunpack.c.h.b16 %v702
        %v878 = vunpack.c.l.b16 %v703
        %v879 = vunpack.c.h.b16 %v703
        %v880 = vunpack.c.l.b16 %v704
        %v881 = vunpack.c.h.b16 %v704
        %v882 = vunpack.c.l.b16 %v705
        %v883 = vunpack.c.h.b16 %v705
        %v884 = vunpack.c.l.b16 %v706
        %v885 = vunpack.c.h.b16 %v706
        %v886 = vunpack.c.l.b16 %v707
        %v887 = vunpack.c.h.b16 %v707
        %v888 = vunpack.c.l.b16 %v708
        %v889 = vunpack.c.h.b16 %v708
        %v890 = vunpack.c.l.b16 %v709
        %v891 = vunpack.c.h.b16 %v709
        %v892 = vunpack.c.l.b16 %v710
        %v893 = vunpack.c.h.b16 %v710
        %v894 = vunpack.c.l.b16 %v711
        %v895 = vunpack.c.h.b16 %v711
        %v896 = vunpack.c.l.b16 %v712
        %v897 = vunpack.c.h.b16 %v712
        %v898 = vunpack.c.l.b16 %v713
        %v899 = vunpack.c.h.b16 %v713
        %v900 = vunpack.c.l.b16 %v714
        %v901 = vunpack.c.h.b16 %v714
        %v902 = vunpack.c.l.b16 %v715
        %v903 = vunpack.c.h.b16 %v715
        %v904 = vunpack.c.l.b16 %v716
        %v905 = vunpack.c.h.b16 %v716
        %v906 = vunpack.c.l.b16 %v717
        %v907 = vunpack.c.h.b16 %v717
        %v908 = vunpack.c.l.b16 %v718
        %v909 = vunpack.c.h.b16 %v718
        %v910 = vunpack.c.l.b16 %v719
        %v911 = vunpack.c.h.b16 %v719
        %v912 = vunpack.c.l.b16 %v720
        %v913 = vunpack.c.h.b16 %v720
        %v914 = vunpack.c.l.b16 %v721
        %v915 = vunpack.c.h.b16 %v721
        %v916 = vunpack.c.l.b16 %v722
        %v917 = vunpack.c.h.b16 %v722
        %v918 = vunpack.c.l.b16 %v723
        %v919 = vunpack.c.h.b16 %v723
        %v920 = vunpack.c.l.b16 %v724
        %v921 = vunpack.c.h.b16 %v724
        %v922 = vunpack.c.l.b16 %v725
        %v923 = vunpack.c.h.b16 %v725
        %v924 = vunpack.c.l.b16 %v726
        %v925 = vunpack.c.h.b16 %v726
        %v926 = vunpack.c.l.b16 %v727
        %v927 = vunpack.c.h.b16 %v727
        %v928 = vunpack.c.l.b16 %v728
        %v929 = vunpack.c.h.b16 %v728
        %v930 = vunpack.c.l.b16 %v729
        %v931 = vunpack.c.h.b16 %v729
        %v932 = vpack.c.b16 %v808, %v804
        %v933 = vpack.c.b16 %v809, %v805
        %v934 = vpack.c.b16 %v810, %v806
        %v935 = vpack.c.b16 %v811, %v807
        %v936 = vpack.c.b16 %v816, %v812
        %v937 = vpack.c.b16 %v817, %v813
        %v938 = vpack.c.b16 %v818, %v814
        %v939 = vpack.c.b16 %v819, %v815
        %v940 = vpack.c.b16 %v824, %v820
        %v941 = vpack.c.b16 %v825, %v821
        %v942 = vpack.c.b16 %v826, %v822
        %v943 = vpack.c.b16 %v827, %v823
        %v944 = vpack.c.b16 %v832, %v828
        %v945 = vpack.c.b16 %v833, %v829
        %v946 = vpack.c.b16 %v834, %v830
        %v947 = vpack.c.b16 %v835, %v831
        %v948 = vpack.c.b16 %v840, %v836
        %v949 = vpack.c.b16 %v841, %v837
        %v950 = vpack.c.b16 %v842, %v838
        %v951 = vpack.c.b16 %v843, %v839
        %v952 = vpack.c.b16 %v848, %v844
        %v953 = vpack.c.b16 %v849, %v845
        %v954 = vpack.c.b16 %v850, %v846
        %v955 = vpack.c.b16 %v851, %v847
        %v956 = vpack.c.b16 %v856, %v852
        %v957 = vpack.c.b16 %v857, %v853
        %v958 = vpack.c.b16 %v858, %v854
        %v959 = vpack.c.b16 %v859, %v855
        %v960 = vpack.c.b16 %v864, %v860
        %v961 = vpack.c.b16 %v865, %v861
        %v962 = vpack.c.b16 %v866, %v862
        %v963 = vpack.c.b16 %v867, %v863
        %v964 = vpack.c.b16 %v872, %v868
        %v965 = vpack.c.b16 %v873, %v869
        %v966 = vpack.c.b16 %v874, %v870
        %v967 = vpack.c.b16 %v875, %v871
        %v968 = vpack.c.b16 %v880, %v876
        %v969 = vpack.c.b16 %v881, %v877
        %v970 = vpack.c.b16 %v882, %v878
        %v971 = vpack.c.b16 %v883, %v879
        %v972 = vpack.c.b16 %v888, %v884
        %v973 = vpack.c.b16 %v889, %v885
        %v974 = vpack.c.b16 %v890, %v886
        %v975 = vpack.c.b16 %v891, %v887
        %v976 = vpack.c.b16 %v896, %v892
        %v977 = vpack.c.b16 %v897, %v893
        %v978 = vpack.c.b16 %v898, %v894
        %v979 = vpack.c.b16 %v899, %v895
        %v980 = vpack.c.b16 %v904, %v900
        %v981 = vpack.c.b16 %v905, %v901
        %v982 = vpack.c.b16 %v906, %v902
        %v983 = vpack.c.b16 %v907, %v903
        %v984 = vpack.c.b16 %v912, %v908
        %v985 = vpack.c.b16 %v913, %v909
        %v986 = vpack.c.b16 %v914, %v910
        %v987 = vpack.c.b16 %v915, %v911
        %v988 = vpack.c.b16 %v920, %v916
        %v989 = vpack.c.b16 %v921, %v917
        %v990 = vpack.c.b16 %v922, %v918
        %v991 = vpack.c.b16 %v923, %v919
        %v992 = vpack.c.b16 %v928, %v924
        %v993 = vpack.c.b16 %v929, %v925
        %v994 = vpack.c.b16 %v930, %v926
        %v995 = vpack.c.b16 %v931, %v927
        %1060 = vmatpush.bf16.msra.mxu0 %v960
        %1061 = vmatpush.bf16.msra.mxu0 %v956
        %1062 = vmatpush.bf16.msra.mxu0 %v952
        %1063 = vmatpush.bf16.msra.mxu0 %v948
        %1064 = vmatpush.bf16.msra.mxu0 %v944
        %1065 = vmatpush.bf16.msra.mxu0 %v940
        %1066 = vmatpush.bf16.msra.mxu0 %v936
        %1067 = vmatpush.bf16.msra.mxu0 %v932
        %1068 = vmatmul.bf16.gmra.mxu0 %v658
        %v1069 = vpop.f32.mrf.mxu0
        %v1070 = vadd.f32 %v732, %v1069
        %v1071 = vpop.f32.mrf.mxu0
        %v1072 = vadd.f32 %v732, %v1071
        %1073 = vmatmul.bf16.gmra.mxu0 %v660
        %v1074 = vpop.f32.mrf.mxu0
        %v1075 = vadd.f32 %v732, %v1074
        %v1076 = vpop.f32.mrf.mxu0
        %v1077 = vadd.f32 %v732, %v1076
        %1078 = vmatmul.bf16.gmra.mxu0 %v662
        %v1079 = vpop.f32.mrf.mxu0
        %v1080 = vadd.f32 %v732, %v1079
        %v1081 = vpop.f32.mrf.mxu0
        %v1082 = vadd.f32 %v732, %v1081
        %1083 = vmatmul.bf16.gmra.mxu0 %v664
        %v1084 = vpop.f32.mrf.mxu0
        %v1085 = vadd.f32 %v732, %v1084
        %v1086 = vpop.f32.mrf.mxu0
        %v1087 = vadd.f32 %v732, %v1086
        %1088 = vdwg.mxu0
        %1089 = vmatpush.bf16.msra.mxu0 %v992
        %1090 = vmatpush.bf16.msra.mxu0 %v988
        %1091 = vmatpush.bf16.msra.mxu0 %v984
        %1092 = vmatpush.bf16.msra.mxu0 %v980
        %1093 = vmatpush.bf16.msra.mxu0 %v976
        %1094 = vmatpush.bf16.msra.mxu0 %v972
        %1095 = vmatpush.bf16.msra.mxu0 %v968
        %1096 = vmatpush.bf16.msra.mxu0 %v964
        %1097 = vmatmul.bf16.gmra.mxu0 %v659
        %v1098 = vpop.f32.mrf.mxu0
        %v1099 = vadd.f32 %v1070, %v1098
        %v1100 = vpop.f32.mrf.mxu0
        %v1101 = vadd.f32 %v1072, %v1100
        %1102 = vmatmul.bf16.gmra.mxu0 %v661
        %v1103 = vpop.f32.mrf.mxu0
        %v1104 = vadd.f32 %v1075, %v1103
        %v1105 = vpop.f32.mrf.mxu0
        %v1106 = vadd.f32 %v1077, %v1105
        %1107 = vmatmul.bf16.gmra.mxu0 %v663
        %v1108 = vpop.f32.mrf.mxu0
        %v1109 = vadd.f32 %v1080, %v1108
        %v1110 = vpop.f32.mrf.mxu0
        %v1111 = vadd.f32 %v1082, %v1110
        %1112 = vmatmul.bf16.gmra.mxu0 %v665
        %v1113 = vpop.f32.mrf.mxu0
        %v1114 = vadd.f32 %v1085, %v1113
        %v1115 = vpop.f32.mrf.mxu0
        %v1116 = vadd.f32 %v1087, %v1115
        %1117 = vdwg.mxu0
        %1118 = vmatpush.bf16.msra.mxu0 %v961
        %1119 = vmatpush.bf16.msra.mxu0 %v957
        %1120 = vmatpush.bf16.msra.mxu0 %v953
        %1121 = vmatpush.bf16.msra.mxu0 %v949
        %1122 = vmatpush.bf16.msra.mxu0 %v945
        %1123 = vmatpush.bf16.msra.mxu0 %v941
        %1124 = vmatpush.bf16.msra.mxu0 %v937
        %1125 = vmatpush.bf16.msra.mxu0 %v933
        %1126 = vmatmul.bf16.gmra.mxu0 %v658
        %v1127 = vpop.f32.mrf.mxu0
        %v1128 = vadd.f32 %v733, %v1127
        %v1129 = vpop.f32.mrf.mxu0
        %v1130 = vadd.f32 %v733, %v1129
        %1131 = vmatmul.bf16.gmra.mxu0 %v660
        %v1132 = vpop.f32.mrf.mxu0
        %v1133 = vadd.f32 %v733, %v1132
        %v1134 = vpop.f32.mrf.mxu0
        %v1135 = vadd.f32 %v733, %v1134
        %1136 = vmatmul.bf16.gmra.mxu0 %v662
        %v1137 = vpop.f32.mrf.mxu0
        %v1138 = vadd.f32 %v733, %v1137
        %v1139 = vpop.f32.mrf.mxu0
        %v1140 = vadd.f32 %v733, %v1139
        %1141 = vmatmul.bf16.gmra.mxu0 %v664
        %v1142 = vpop.f32.mrf.mxu0
        %v1143 = vadd.f32 %v733, %v1142
        %v1144 = vpop.f32.mrf.mxu0
        %v1145 = vadd.f32 %v733, %v1144
        %1146 = vdwg.mxu0
        %1147 = vmatpush.bf16.msra.mxu0 %v993
        %1148 = vmatpush.bf16.msra.mxu0 %v989
        %1149 = vmatpush.bf16.msra.mxu0 %v985
        %1150 = vmatpush.bf16.msra.mxu0 %v981
        %1151 = vmatpush.bf16.msra.mxu0 %v977
        %1152 = vmatpush.bf16.msra.mxu0 %v973
        %1153 = vmatpush.bf16.msra.mxu0 %v969
        %1154 = vmatpush.bf16.msra.mxu0 %v965
        %1155 = vmatmul.bf16.gmra.mxu0 %v659
        %v1156 = vpop.f32.mrf.mxu0
        %v1157 = vadd.f32 %v1128, %v1156
        %v1158 = vpop.f32.mrf.mxu0
        %v1159 = vadd.f32 %v1130, %v1158
        %1160 = vmatmul.bf16.gmra.mxu0 %v661
        %v1161 = vpop.f32.mrf.mxu0
        %v1162 = vadd.f32 %v1133, %v1161
        %v1163 = vpop.f32.mrf.mxu0
        %v1164 = vadd.f32 %v1135, %v1163
        %1165 = vmatmul.bf16.gmra.mxu0 %v663
        %v1166 = vpop.f32.mrf.mxu0
        %v1167 = vadd.f32 %v1138, %v1166
        %v1168 = vpop.f32.mrf.mxu0
        %v1169 = vadd.f32 %v1140, %v1168
        %1170 = vmatmul.bf16.gmra.mxu0 %v665
        %v1171 = vpop.f32.mrf.mxu0
        %v1172 = vadd.f32 %v1143, %v1171
        %v1173 = vpop.f32.mrf.mxu0
        %v1174 = vadd.f32 %v1145, %v1173
        %1175 = vdwg.mxu0
        %1176 = vmatpush.bf16.msra.mxu0 %v962
        %1177 = vmatpush.bf16.msra.mxu0 %v958
        %1178 = vmatpush.bf16.msra.mxu0 %v954
        %1179 = vmatpush.bf16.msra.mxu0 %v950
        %1180 = vmatpush.bf16.msra.mxu0 %v946
        %1181 = vmatpush.bf16.msra.mxu0 %v942
        %1182 = vmatpush.bf16.msra.mxu0 %v938
        %1183 = vmatpush.bf16.msra.mxu0 %v934
        %1184 = vmatmul.bf16.gmra.mxu0 %v658
        %v1185 = vpop.f32.mrf.mxu0
        %v1186 = vadd.f32 %v734, %v1185
        %v1187 = vpop.f32.mrf.mxu0
        %v1188 = vadd.f32 %v734, %v1187
        %1189 = vmatmul.bf16.gmra.mxu0 %v660
        %v1190 = vpop.f32.mrf.mxu0
        %v1191 = vadd.f32 %v734, %v1190
        %v1192 = vpop.f32.mrf.mxu0
        %v1193 = vadd.f32 %v734, %v1192
        %1194 = vmatmul.bf16.gmra.mxu0 %v662
        %v1195 = vpop.f32.mrf.mxu0
        %v1196 = vadd.f32 %v734, %v1195
        %v1197 = vpop.f32.mrf.mxu0
        %v1198 = vadd.f32 %v734, %v1197
        %1199 = vmatmul.bf16.gmra.mxu0 %v664
        %v1200 = vpop.f32.mrf.mxu0
        %v1201 = vadd.f32 %v734, %v1200
        %v1202 = vpop.f32.mrf.mxu0
        %v1203 = vadd.f32 %v734, %v1202
        %1204 = vdwg.mxu0
        %1205 = vmatpush.bf16.msra.mxu0 %v994
        %1206 = vmatpush.bf16.msra.mxu0 %v990
        %1207 = vmatpush.bf16.msra.mxu0 %v986
        %1208 = vmatpush.bf16.msra.mxu0 %v982
        %1209 = vmatpush.bf16.msra.mxu0 %v978
        %1210 = vmatpush.bf16.msra.mxu0 %v974
        %1211 = vmatpush.bf16.msra.mxu0 %v970
        %1212 = vmatpush.bf16.msra.mxu0 %v966
        %1213 = vmatmul.bf16.gmra.mxu0 %v659
        %v1214 = vpop.f32.mrf.mxu0
        %v1215 = vadd.f32 %v1186, %v1214
        %v1216 = vpop.f32.mrf.mxu0
        %v1217 = vadd.f32 %v1188, %v1216
        %1218 = vmatmul.bf16.gmra.mxu0 %v661
        %v1219 = vpop.f32.mrf.mxu0
        %v1220 = vadd.f32 %v1191, %v1219
        %v1221 = vpop.f32.mrf.mxu0
        %v1222 = vadd.f32 %v1193, %v1221
        %1223 = vmatmul.bf16.gmra.mxu0 %v663
        %v1224 = vpop.f32.mrf.mxu0
        %v1225 = vadd.f32 %v1196, %v1224
        %v1226 = vpop.f32.mrf.mxu0
        %v1227 = vadd.f32 %v1198, %v1226
        %1228 = vmatmul.bf16.gmra.mxu0 %v665
        %v1229 = vpop.f32.mrf.mxu0
        %v1230 = vadd.f32 %v1201, %v1229
        %v1231 = vpop.f32.mrf.mxu0
        %v1232 = vadd.f32 %v1203, %v1231
        %1233 = vdwg.mxu0
        %1234 = vmatpush.bf16.msra.mxu0 %v963
        %1235 = vmatpush.bf16.msra.mxu0 %v959
        %1236 = vmatpush.bf16.msra.mxu0 %v955
        %1237 = vmatpush.bf16.msra.mxu0 %v951
        %1238 = vmatpush.bf16.msra.mxu0 %v947
        %1239 = vmatpush.bf16.msra.mxu0 %v943
        %1240 = vmatpush.bf16.msra.mxu0 %v939
        %1241 = vmatpush.bf16.msra.mxu0 %v935
        %1242 = vmatmul.bf16.gmra.mxu0 %v658
        %v1243 = vpop.f32.mrf.mxu0
        %v1244 = vadd.f32 %v735, %v1243
        %v1245 = vpop.f32.mrf.mxu0
        %v1246 = vadd.f32 %v735, %v1245
        %1247 = vmatmul.bf16.gmra.mxu0 %v660
        %v1248 = vpop.f32.mrf.mxu0
        %v1249 = vadd.f32 %v735, %v1248
        %v1250 = vpop.f32.mrf.mxu0
        %v1251 = vadd.f32 %v735, %v1250
        %1252 = vmatmul.bf16.gmra.mxu0 %v662
        %v1253 = vpop.f32.mrf.mxu0
        %v1254 = vadd.f32 %v735, %v1253
        %v1255 = vpop.f32.mrf.mxu0
        %v1256 = vadd.f32 %v735, %v1255
        %1257 = vmatmul.bf16.gmra.mxu0 %v664
        %v1258 = vpop.f32.mrf.mxu0
        %v1259 = vadd.f32 %v735, %v1258
        %v1260 = vpop.f32.mrf.mxu0
        %v1261 = vadd.f32 %v735, %v1260
        %1262 = vdwg.mxu0
        %1263 = vmatpush.bf16.msra.mxu0 %v995
        %1264 = vmatpush.bf16.msra.mxu0 %v991
        %1265 = vmatpush.bf16.msra.mxu0 %v987
        %1266 = vmatpush.bf16.msra.mxu0 %v983
        %1267 = vmatpush.bf16.msra.mxu0 %v979
        %1268 = vmatpush.bf16.msra.mxu0 %v975
        %1269 = vmatpush.bf16.msra.mxu0 %v971
        %1270 = vmatpush.bf16.msra.mxu0 %v967
        %1271 = vmatmul.bf16.gmra.mxu0 %v659
        %v1272 = vpop.f32.mrf.mxu0
        %v1273 = vadd.f32 %v1244, %v1272
        %v1274 = vpop.f32.mrf.mxu0
        %v1275 = vadd.f32 %v1246, %v1274
        %1276 = vmatmul.bf16.gmra.mxu0 %v661
        %v1277 = vpop.f32.mrf.mxu0
        %v1278 = vadd.f32 %v1249, %v1277
        %v1279 = vpop.f32.mrf.mxu0
        %v1280 = vadd.f32 %v1251, %v1279
        %1281 = vmatmul.bf16.gmra.mxu0 %v663
        %v1282 = vpop.f32.mrf.mxu0
        %v1283 = vadd.f32 %v1254, %v1282
        %v1284 = vpop.f32.mrf.mxu0
        %v1285 = vadd.f32 %v1256, %v1284
        %1286 = vmatmul.bf16.gmra.mxu0 %v665
        %v1287 = vpop.f32.mrf.mxu0
        %v1288 = vadd.f32 %v1259, %v1287
        %v1289 = vpop.f32.mrf.mxu0
        %v1290 = vadd.f32 %v1261, %v1289
        %1291 = vdwg.mxu0
        %v1292 = vmax.f32 %v1099, 0.0
        %v1293 = vmax.f32 %v1157, 0.0
        %v1294 = vmax.f32 %v1215, 0.0
        %v1295 = vmax.f32 %v1273, 0.0
        %v1296 = vmax.f32 %v1101, 0.0
        %v1297 = vmax.f32 %v1159, 0.0
        %v1298 = vmax.f32 %v1217, 0.0
        %v1299 = vmax.f32 %v1275, 0.0
        %v1300 = vmax.f32 %v1104, 0.0
        %v1301 = vmax.f32 %v1162, 0.0
        %v1302 = vmax.f32 %v1220, 0.0
        %v1303 = vmax.f32 %v1278, 0.0
        %v1304 = vmax.f32 %v1106, 0.0
        %v1305 = vmax.f32 %v1164, 0.0
        %v1306 = vmax.f32 %v1222, 0.0
        %v1307 = vmax.f32 %v1280, 0.0
        %v1308 = vmax.f32 %v1109, 0.0
        %v1309 = vmax.f32 %v1167, 0.0
        %v1310 = vmax.f32 %v1225, 0.0
        %v1311 = vmax.f32 %v1283, 0.0
        %v1312 = vmax.f32 %v1111, 0.0
        %v1313 = vmax.f32 %v1169, 0.0
        %v1314 = vmax.f32 %v1227, 0.0
        %v1315 = vmax.f32 %v1285, 0.0
        %v1316 = vmax.f32 %v1114, 0.0
        %v1317 = vmax.f32 %v1172, 0.0
        %v1318 = vmax.f32 %v1230, 0.0
        %v1319 = vmax.f32 %v1288, 0.0
        %v1320 = vmax.f32 %v1116, 0.0
        %v1321 = vmax.f32 %v1174, 0.0
        %v1322 = vmax.f32 %v1232, 0.0
        %v1323 = vmax.f32 %v1290, 0.0
        %v1324 = vpack.c.bf16 %v1296, %v1292
        %v1325 = vpack.c.bf16 %v1297, %v1293
        %v1326 = vpack.c.bf16 %v1298, %v1294
        %v1327 = vpack.c.bf16 %v1299, %v1295
        %v1328 = vpack.c.bf16 %v1304, %v1300
        %v1329 = vpack.c.bf16 %v1305, %v1301
        %v1330 = vpack.c.bf16 %v1306, %v1302
        %v1331 = vpack.c.bf16 %v1307, %v1303
        %v1332 = vpack.c.bf16 %v1312, %v1308
        %v1333 = vpack.c.bf16 %v1313, %v1309
        %v1334 = vpack.c.bf16 %v1314, %v1310
        %v1335 = vpack.c.bf16 %v1315, %v1311
        %v1336 = vpack.c.bf16 %v1320, %v1316
        %v1337 = vpack.c.bf16 %v1321, %v1317
        %v1338 = vpack.c.bf16 %v1322, %v1318
        %v1339 = vpack.c.bf16 %v1323, %v1319
        %v1340 = vld [vmem:[#allocation11] sm:$0xf]
        %v1341 = vld [vmem:[#allocation11 + $0x4] sm:$0xf]
        %v1342 = vld [vmem:[#allocation11 + $0x8] sm:$0xf]
        %v1343 = vld [vmem:[#allocation11 + $0xc] sm:$0xf]
        %v1344 = vld [vmem:[#allocation11 + $0x10] sm:$0xf]
        %v1345 = vld [vmem:[#allocation11 + $0x14] sm:$0xf]
        %v1346 = vld [vmem:[#allocation11 + $0x18] sm:$0xf]
        %v1347 = vld [vmem:[#allocation11 + $0x1c] sm:$0xf]
        %v1348 = vld [vmem:[#allocation11 + $0x20] sm:$0xf]
        %v1349 = vld [vmem:[#allocation11 + $0x24] sm:$0xf]
        %v1350 = vld [vmem:[#allocation11 + $0x28] sm:$0xf]
        %v1351 = vld [vmem:[#allocation11 + $0x2c] sm:$0xf]
        %v1352 = vld [vmem:[#allocation11 + $0x30] sm:$0xf]
        %v1353 = vld [vmem:[#allocation11 + $0x34] sm:$0xf]
        %v1354 = vld [vmem:[#allocation11 + $0x38] sm:$0xf]
        %v1355 = vld [vmem:[#allocation11 + $0x3c] sm:$0xf]
        %v1356 = vld [vmem:[#allocation11 + $0x40] sm:$0xf]
        %v1357 = vld [vmem:[#allocation11 + $0x44] sm:$0xf]
        %v1358 = vld [vmem:[#allocation11 + $0x48] sm:$0xf]
        %v1359 = vld [vmem:[#allocation11 + $0x4c] sm:$0xf]
        %v1360 = vld [vmem:[#allocation11 + $0x50] sm:$0xf]
        %v1361 = vld [vmem:[#allocation11 + $0x54] sm:$0xf]
        %v1362 = vld [vmem:[#allocation11 + $0x58] sm:$0xf]
        %v1363 = vld [vmem:[#allocation11 + $0x5c] sm:$0xf]
        %v1364 = vld [vmem:[#allocation11 + $0x60] sm:$0xf]
        %v1365 = vld [vmem:[#allocation11 + $0x64] sm:$0xf]
        %v1366 = vld [vmem:[#allocation11 + $0x68] sm:$0xf]
        %v1367 = vld [vmem:[#allocation11 + $0x6c] sm:$0xf]
        %v1368 = vld [vmem:[#allocation11 + $0x70] sm:$0xf]
        %v1369 = vld [vmem:[#allocation11 + $0x74] sm:$0xf]
        %v1370 = vld [vmem:[#allocation11 + $0x78] sm:$0xf]
        %v1371 = vld [vmem:[#allocation11 + $0x7c] sm:$0xf]
        %v1372 = vld [vmem:[#allocation11 + $0x80] sm:$0xf]
        %v1373 = vld [vmem:[#allocation11 + $0x84] sm:$0xf]
        %v1374 = vld [vmem:[#allocation11 + $0x88] sm:$0xf]
        %v1375 = vld [vmem:[#allocation11 + $0x8c] sm:$0xf]
        %v1376 = vld [vmem:[#allocation11 + $0x90] sm:$0xf]
        %v1377 = vld [vmem:[#allocation11 + $0x94] sm:$0xf]
        %v1378 = vld [vmem:[#allocation11 + $0x98] sm:$0xf]
        %v1379 = vld [vmem:[#allocation11 + $0x9c] sm:$0xf]
        %v1380 = vld [vmem:[#allocation11 + $0xa0] sm:$0xf]
        %v1381 = vld [vmem:[#allocation11 + $0xa4] sm:$0xf]
        %v1382 = vld [vmem:[#allocation11 + $0xa8] sm:$0xf]
        %v1383 = vld [vmem:[#allocation11 + $0xac] sm:$0xf]
        %v1384 = vld [vmem:[#allocation11 + $0xb0] sm:$0xf]
        %v1385 = vld [vmem:[#allocation11 + $0xb4] sm:$0xf]
        %v1386 = vld [vmem:[#allocation11 + $0xb8] sm:$0xf]
        %v1387 = vld [vmem:[#allocation11 + $0xbc] sm:$0xf]
        %v1388 = vld [vmem:[#allocation11 + $0xc0] sm:$0xf]
        %v1389 = vld [vmem:[#allocation11 + $0xc4] sm:$0xf]
        %v1390 = vld [vmem:[#allocation11 + $0xc8] sm:$0xf]
        %v1391 = vld [vmem:[#allocation11 + $0xcc] sm:$0xf]
        %v1392 = vld [vmem:[#allocation11 + $0xd0] sm:$0xf]
        %v1393 = vld [vmem:[#allocation11 + $0xd4] sm:$0xf]
        %v1394 = vld [vmem:[#allocation11 + $0xd8] sm:$0xf]
        %v1395 = vld [vmem:[#allocation11 + $0xdc] sm:$0xf]
        %v1396 = vld [vmem:[#allocation11 + $0xe0] sm:$0xf]
        %v1397 = vld [vmem:[#allocation11 + $0xe4] sm:$0xf]
        %v1398 = vld [vmem:[#allocation11 + $0xe8] sm:$0xf]
        %v1399 = vld [vmem:[#allocation11 + $0xec] sm:$0xf]
        %v1400 = vld [vmem:[#allocation11 + $0xf0] sm:$0xf]
        %v1401 = vld [vmem:[#allocation11 + $0xf4] sm:$0xf]
        %v1402 = vld [vmem:[#allocation11 + $0xf8] sm:$0xf]
        %v1403 = vld [vmem:[#allocation11 + $0xfc] sm:$0xf]
        %v1404 = vld [vmem:[%s6] sm:$0x1]
        %v1406 = vperm.slane %v1404, 0
        %v1472 = vunpack.c.l.b16 %v1340
        %v1473 = vunpack.c.l.b16 %v1341
        %v1474 = vunpack.c.l.b16 %v1342
        %v1475 = vunpack.c.l.b16 %v1343
        %v1476 = vunpack.c.l.b16 %v1344
        %v1477 = vunpack.c.l.b16 %v1345
        %v1478 = vunpack.c.l.b16 %v1346
        %v1479 = vunpack.c.l.b16 %v1347
        %v1480 = vunpack.c.l.b16 %v1348
        %v1481 = vunpack.c.l.b16 %v1349
        %v1482 = vunpack.c.l.b16 %v1350
        %v1483 = vunpack.c.l.b16 %v1351
        %v1484 = vunpack.c.l.b16 %v1352
        %v1485 = vunpack.c.l.b16 %v1353
        %v1486 = vunpack.c.l.b16 %v1354
        %v1487 = vunpack.c.l.b16 %v1355
        %v1488 = vunpack.c.l.b16 %v1356
        %v1489 = vunpack.c.l.b16 %v1357
        %v1490 = vunpack.c.l.b16 %v1358
        %v1491 = vunpack.c.l.b16 %v1359
        %v1492 = vunpack.c.l.b16 %v1360
        %v1493 = vunpack.c.l.b16 %v1361
        %v1494 = vunpack.c.l.b16 %v1362
        %v1495 = vunpack.c.l.b16 %v1363
        %v1496 = vunpack.c.l.b16 %v1364
        %v1497 = vunpack.c.l.b16 %v1365
        %v1498 = vunpack.c.l.b16 %v1366
        %v1499 = vunpack.c.l.b16 %v1367
        %v1500 = vunpack.c.l.b16 %v1368
        %v1501 = vunpack.c.l.b16 %v1369
        %v1502 = vunpack.c.l.b16 %v1370
        %v1503 = vunpack.c.l.b16 %v1371
        %v1504 = vunpack.c.l.b16 %v1372
        %v1505 = vunpack.c.l.b16 %v1373
        %v1506 = vunpack.c.l.b16 %v1374
        %v1507 = vunpack.c.l.b16 %v1375
        %v1508 = vunpack.c.l.b16 %v1376
        %v1509 = vunpack.c.l.b16 %v1377
        %v1510 = vunpack.c.l.b16 %v1378
        %v1511 = vunpack.c.l.b16 %v1379
        %v1512 = vunpack.c.l.b16 %v1380
        %v1513 = vunpack.c.l.b16 %v1381
        %v1514 = vunpack.c.l.b16 %v1382
        %v1515 = vunpack.c.l.b16 %v1383
        %v1516 = vunpack.c.l.b16 %v1384
        %v1517 = vunpack.c.l.b16 %v1385
        %v1518 = vunpack.c.l.b16 %v1386
        %v1519 = vunpack.c.l.b16 %v1387
        %v1520 = vunpack.c.l.b16 %v1388
        %v1521 = vunpack.c.l.b16 %v1389
        %v1522 = vunpack.c.l.b16 %v1390
        %v1523 = vunpack.c.l.b16 %v1391
        %v1524 = vunpack.c.l.b16 %v1392
        %v1525 = vunpack.c.l.b16 %v1393
        %v1526 = vunpack.c.l.b16 %v1394
        %v1527 = vunpack.c.l.b16 %v1395
        %v1528 = vunpack.c.l.b16 %v1396
        %v1529 = vunpack.c.l.b16 %v1397
        %v1530 = vunpack.c.l.b16 %v1398
        %v1531 = vunpack.c.l.b16 %v1399
        %v1532 = vunpack.c.l.b16 %v1400
        %v1533 = vunpack.c.l.b16 %v1401
        %v1534 = vunpack.c.l.b16 %v1402
        %v1535 = vunpack.c.l.b16 %v1403
        %v1536 = vpack.c.b16 %v1473, %v1472
        %v1537 = vpack.c.b16 %v1475, %v1474
        %v1538 = vpack.c.b16 %v1477, %v1476
        %v1539 = vpack.c.b16 %v1479, %v1478
        %v1540 = vpack.c.b16 %v1481, %v1480
        %v1541 = vpack.c.b16 %v1483, %v1482
        %v1542 = vpack.c.b16 %v1485, %v1484
        %v1543 = vpack.c.b16 %v1487, %v1486
        %v1544 = vpack.c.b16 %v1489, %v1488
        %v1545 = vpack.c.b16 %v1491, %v1490
        %v1546 = vpack.c.b16 %v1493, %v1492
        %v1547 = vpack.c.b16 %v1495, %v1494
        %v1548 = vpack.c.b16 %v1497, %v1496
        %v1549 = vpack.c.b16 %v1499, %v1498
        %v1550 = vpack.c.b16 %v1501, %v1500
        %v1551 = vpack.c.b16 %v1503, %v1502
        %v1552 = vpack.c.b16 %v1505, %v1504
        %v1553 = vpack.c.b16 %v1507, %v1506
        %v1554 = vpack.c.b16 %v1509, %v1508
        %v1555 = vpack.c.b16 %v1511, %v1510
        %v1556 = vpack.c.b16 %v1513, %v1512
        %v1557 = vpack.c.b16 %v1515, %v1514
        %v1558 = vpack.c.b16 %v1517, %v1516
        %v1559 = vpack.c.b16 %v1519, %v1518
        %v1560 = vpack.c.b16 %v1521, %v1520
        %v1561 = vpack.c.b16 %v1523, %v1522
        %v1562 = vpack.c.b16 %v1525, %v1524
        %v1563 = vpack.c.b16 %v1527, %v1526
        %v1564 = vpack.c.b16 %v1529, %v1528
        %v1565 = vpack.c.b16 %v1531, %v1530
        %v1566 = vpack.c.b16 %v1533, %v1532
        %v1567 = vpack.c.b16 %v1535, %v1534
        %1600 = vmatpush.bf16.msra.mxu0 %v1543
        %1601 = vmatpush.bf16.msra.mxu0 %v1542
        %1602 = vmatpush.bf16.msra.mxu0 %v1541
        %1603 = vmatpush.bf16.msra.mxu0 %v1540
        %1604 = vmatpush.bf16.msra.mxu0 %v1539
        %1605 = vmatpush.bf16.msra.mxu0 %v1538
        %1606 = vmatpush.bf16.msra.mxu0 %v1537
        %1607 = vmatpush.bf16.msra.mxu0 %v1536
        %1608 = vmatmul.bf16.gmra.mxu0 %v1324
        %v1609 = vpop.f32.mrf.mxu0
        %v1610 = vadd.f32 %v1406, %v1609
        %v1611 = vpop.f32.mrf.mxu0
        %v1612 = vadd.f32 %v1406, %v1611
        %1613 = vmatmul.bf16.gmra.mxu0 %v1328
        %v1614 = vpop.f32.mrf.mxu0
        %v1615 = vadd.f32 %v1406, %v1614
        %v1616 = vpop.f32.mrf.mxu0
        %v1617 = vadd.f32 %v1406, %v1616
        %1618 = vmatmul.bf16.gmra.mxu0 %v1332
        %v1619 = vpop.f32.mrf.mxu0
        %v1620 = vadd.f32 %v1406, %v1619
        %v1621 = vpop.f32.mrf.mxu0
        %v1622 = vadd.f32 %v1406, %v1621
        %1623 = vmatmul.bf16.gmra.mxu0 %v1336
        %v1624 = vpop.f32.mrf.mxu0
        %v1625 = vadd.f32 %v1406, %v1624
        %v1626 = vpop.f32.mrf.mxu0
        %v1627 = vadd.f32 %v1406, %v1626
        %1628 = vdwg.mxu0
        %1629 = vmatpush.bf16.msra.mxu0 %v1551
        %1630 = vmatpush.bf16.msra.mxu0 %v1550
        %1631 = vmatpush.bf16.msra.mxu0 %v1549
        %1632 = vmatpush.bf16.msra.mxu0 %v1548
        %1633 = vmatpush.bf16.msra.mxu0 %v1547
        %1634 = vmatpush.bf16.msra.mxu0 %v1546
        %1635 = vmatpush.bf16.msra.mxu0 %v1545
        %1636 = vmatpush.bf16.msra.mxu0 %v1544
        %1637 = vmatmul.bf16.gmra.mxu0 %v1325
        %v1638 = vpop.f32.mrf.mxu0
        %v1639 = vadd.f32 %v1610, %v1638
        %v1640 = vpop.f32.mrf.mxu0
        %v1641 = vadd.f32 %v1612, %v1640
        %1642 = vmatmul.bf16.gmra.mxu0 %v1329
        %v1643 = vpop.f32.mrf.mxu0
        %v1644 = vadd.f32 %v1615, %v1643
        %v1645 = vpop.f32.mrf.mxu0
        %v1646 = vadd.f32 %v1617, %v1645
        %1647 = vmatmul.bf16.gmra.mxu0 %v1333
        %v1648 = vpop.f32.mrf.mxu0
        %v1649 = vadd.f32 %v1620, %v1648
        %v1650 = vpop.f32.mrf.mxu0
        %v1651 = vadd.f32 %v1622, %v1650
        %1652 = vmatmul.bf16.gmra.mxu0 %v1337
        %v1653 = vpop.f32.mrf.mxu0
        %v1654 = vadd.f32 %v1625, %v1653
        %v1655 = vpop.f32.mrf.mxu0
        %v1656 = vadd.f32 %v1627, %v1655
        %1657 = vdwg.mxu0
        %1658 = vmatpush.bf16.msra.mxu0 %v1559
        %1659 = vmatpush.bf16.msra.mxu0 %v1558
        %1660 = vmatpush.bf16.msra.mxu0 %v1557
        %1661 = vmatpush.bf16.msra.mxu0 %v1556
        %1662 = vmatpush.bf16.msra.mxu0 %v1555
        %1663 = vmatpush.bf16.msra.mxu0 %v1554
        %1664 = vmatpush.bf16.msra.mxu0 %v1553
        %1665 = vmatpush.bf16.msra.mxu0 %v1552
        %1666 = vmatmul.bf16.gmra.mxu0 %v1326
        %v1667 = vpop.f32.mrf.mxu0
        %v1668 = vadd.f32 %v1639, %v1667
        %v1669 = vpop.f32.mrf.mxu0
        %v1670 = vadd.f32 %v1641, %v1669
        %1671 = vmatmul.bf16.gmra.mxu0 %v1330
        %v1672 = vpop.f32.mrf.mxu0
        %v1673 = vadd.f32 %v1644, %v1672
        %v1674 = vpop.f32.mrf.mxu0
        %v1675 = vadd.f32 %v1646, %v1674
        %1676 = vmatmul.bf16.gmra.mxu0 %v1334
        %v1677 = vpop.f32.mrf.mxu0
        %v1678 = vadd.f32 %v1649, %v1677
        %v1679 = vpop.f32.mrf.mxu0
        %v1680 = vadd.f32 %v1651, %v1679
        %1681 = vmatmul.bf16.gmra.mxu0 %v1338
        %v1682 = vpop.f32.mrf.mxu0
        %v1683 = vadd.f32 %v1654, %v1682
        %v1684 = vpop.f32.mrf.mxu0
        %v1685 = vadd.f32 %v1656, %v1684
        %1686 = vdwg.mxu0
        %1687 = vmatpush.bf16.msra.mxu0 %v1567
        %1688 = vmatpush.bf16.msra.mxu0 %v1566
        %1689 = vmatpush.bf16.msra.mxu0 %v1565
        %1690 = vmatpush.bf16.msra.mxu0 %v1564
        %1691 = vmatpush.bf16.msra.mxu0 %v1563
        %1692 = vmatpush.bf16.msra.mxu0 %v1562
        %1693 = vmatpush.bf16.msra.mxu0 %v1561
        %1694 = vmatpush.bf16.msra.mxu0 %v1560
        %1695 = vmatmul.bf16.gmra.mxu0 %v1327
        %v1696 = vpop.f32.mrf.mxu0
        %v1697 = vadd.f32 %v1668, %v1696
        %v1698 = vpop.f32.mrf.mxu0
        %v1699 = vadd.f32 %v1670, %v1698
        %1700 = vmatmul.bf16.gmra.mxu0 %v1331
        %v1701 = vpop.f32.mrf.mxu0
        %v1702 = vadd.f32 %v1673, %v1701
        %v1703 = vpop.f32.mrf.mxu0
        %v1704 = vadd.f32 %v1675, %v1703
        %1705 = vmatmul.bf16.gmra.mxu0 %v1335
        %v1706 = vpop.f32.mrf.mxu0
        %v1707 = vadd.f32 %v1678, %v1706
        %v1708 = vpop.f32.mrf.mxu0
        %v1709 = vadd.f32 %v1680, %v1708
        %1710 = vmatmul.bf16.gmra.mxu0 %v1339
        %v1711 = vpop.f32.mrf.mxu0
        %v1712 = vadd.f32 %v1683, %v1711
        %v1713 = vpop.f32.mrf.mxu0
        %v1714 = vadd.f32 %v1685, %v1713
        %1715 = vdwg.mxu0
        %v1716 = vmax.f32 %v1697, 0.0
        %v1717 = vmax.f32 %v1699, 0.0
        %v1718 = vmax.f32 %v1702, 0.0
        %v1719 = vmax.f32 %v1704, 0.0
        %v1720 = vmax.f32 %v1707, 0.0
        %v1721 = vmax.f32 %v1709, 0.0
        %v1722 = vmax.f32 %v1712, 0.0
        %v1723 = vmax.f32 %v1714, 0.0
        %v1724 = vpack.c.bf16 %v1717, %v1716
        %v1725 = vpack.c.bf16 %v1719, %v1718
        %v1726 = vpack.c.bf16 %v1721, %v1720
        %v1727 = vpack.c.bf16 %v1723, %v1722
        %v1728 = vld [vmem:[#allocation13] sm:$0xf]
        %v1729 = vld [vmem:[#allocation13 + $0x4] sm:$0xf]
        %v1730 = vld [vmem:[#allocation13 + $0x8] sm:$0xf]
        %v1731 = vld [vmem:[#allocation13 + $0xc] sm:$0xf]
        %v1732 = vld [vmem:[#allocation13 + $0x10] sm:$0xf]
        %v1733 = vld [vmem:[#allocation13 + $0x14] sm:$0xf]
        %v1734 = vld [vmem:[#allocation13 + $0x18] sm:$0xf]
        %v1735 = vld [vmem:[#allocation13 + $0x1c] sm:$0xf]
        %v1736 = vld [vmem:[#allocation13 + $0x20] sm:$0xf]
        %v1737 = vld [vmem:[#allocation13 + $0x24] sm:$0xf]
        %v1738 = vld [vmem:[#allocation13 + $0x28] sm:$0xf]
        %v1739 = vld [vmem:[#allocation13 + $0x2c] sm:$0xf]
        %v1740 = vld [vmem:[#allocation13 + $0x30] sm:$0xf]
        %v1741 = vld [vmem:[#allocation13 + $0x34] sm:$0xf]
        %v1742 = vld [vmem:[#allocation13 + $0x38] sm:$0xf]
        %v1743 = vld [vmem:[#allocation13 + $0x3c] sm:$0xf]
        %v1744 = vld [vmem:[%s8] sm:$0x1]
        %v1746 = vperm.slane %v1744, 0
        %v1764 = vunpack.c.l.b16 %v1728
        %v1765 = vunpack.c.l.b16 %v1729
        %v1766 = vunpack.c.l.b16 %v1730
        %v1767 = vunpack.c.l.b16 %v1731
        %v1768 = vunpack.c.l.b16 %v1732
        %v1769 = vunpack.c.l.b16 %v1733
        %v1770 = vunpack.c.l.b16 %v1734
        %v1771 = vunpack.c.l.b16 %v1735
        %v1772 = vunpack.c.l.b16 %v1736
        %v1773 = vunpack.c.l.b16 %v1737
        %v1774 = vunpack.c.l.b16 %v1738
        %v1775 = vunpack.c.l.b16 %v1739
        %v1776 = vunpack.c.l.b16 %v1740
        %v1777 = vunpack.c.l.b16 %v1741
        %v1778 = vunpack.c.l.b16 %v1742
        %v1779 = vunpack.c.l.b16 %v1743
        %v1780 = vpack.c.b16 %v1765, %v1764
        %v1781 = vpack.c.b16 %v1767, %v1766
        %v1782 = vpack.c.b16 %v1769, %v1768
        %v1783 = vpack.c.b16 %v1771, %v1770
        %v1784 = vpack.c.b16 %v1773, %v1772
        %v1785 = vpack.c.b16 %v1775, %v1774
        %v1786 = vpack.c.b16 %v1777, %v1776
        %v1787 = vpack.c.b16 %v1779, %v1778
        %1796 = vmatpush.bf16.msra.mxu0 %v1787
        %1797 = vmatpush.bf16.msra.mxu0 %v1786
        %1798 = vmatpush.bf16.msra.mxu0 %v1785
        %1799 = vmatpush.bf16.msra.mxu0 %v1784
        %1800 = vmatpush.bf16.msra.mxu0 %v1783
        %1801 = vmatpush.bf16.msra.mxu0 %v1782
        %1802 = vmatpush.bf16.msra.mxu0 %v1781
        %1803 = vmatpush.bf16.msra.mxu0 %v1780
        %1804 = vmatmul.bf16.gmra.mxu0 %v1724
        %v1805 = vpop.f32.mrf.mxu0
        %v1806 = vadd.f32 %v1746, %v1805
        %v1807 = vpop.f32.mrf.mxu0
        %v1808 = vadd.f32 %v1746, %v1807
        %1809 = vmatmul.bf16.gmra.mxu0 %v1725
        %v1810 = vpop.f32.mrf.mxu0
        %v1811 = vadd.f32 %v1746, %v1810
        %v1812 = vpop.f32.mrf.mxu0
        %v1813 = vadd.f32 %v1746, %v1812
        %1814 = vmatmul.bf16.gmra.mxu0 %v1726
        %v1815 = vpop.f32.mrf.mxu0
        %v1816 = vadd.f32 %v1746, %v1815
        %v1817 = vpop.f32.mrf.mxu0
        %v1818 = vadd.f32 %v1746, %v1817
        %1819 = vmatmul.bf16.gmra.mxu0 %v1727
        %v1820 = vpop.f32.mrf.mxu0
        %v1821 = vadd.f32 %v1746, %v1820
        %v1822 = vpop.f32.mrf.mxu0
        %v1823 = vadd.f32 %v1746, %v1822
        %1824 = vdwg.mxu0
        %1825 = vst [vmem:[%s447] sm:$0xff] %v1806
        %1826 = vst [vmem:[%s447 + $0x8] sm:$0xff] %v1808
        %1827 = vst [vmem:[%s447 + $0x10] sm:$0xff] %v1811
        %1828 = vst [vmem:[%s447 + $0x18] sm:$0xff] %v1813
        %1829 = vst [vmem:[%s447 + $0x20] sm:$0xff] %v1816
        %1830 = vst [vmem:[%s447 + $0x28] sm:$0xff] %v1818
        %1831 = vst [vmem:[%s447 + $0x30] sm:$0xff] %v1821
        %1832 = vst [vmem:[%s447 + $0x38] sm:$0xff] %v1823
        %s1833 = sand.u32 %s231, 1
        %s1834 = scalar_lea.sflag [#allocation4], %s1833
        %s1835 = sand.u32 %s231, 1
        %s1836 = smul.addr %s1835, 64
        %s1837 = scalar_lea.vmem [#allocation14], %s1836
        // Predicated region
        $region85: #{tpu_custom_call.1} parent=55 // pred_check
          %p1838 = pneg %p241
        $region86: #{tpu_custom_call.1} parent=55 // pred_check_branch
          %1840 = sbr.rel (%p1838) target = $region88
        $region87: #{tpu_custom_call.1} parent=55 // pred_region
          %s1841 = smul.u32 8, %s29
          %1843 = vsyncadd %s1834, 0
          %s1844 = smul.addr %s1841, 8
          %s1845 = scalar_lea.hbm %s9, %s1844
          %s1846 = sshll.u32 %s1837, 4
          %s1847 = int_to_ptr.vmem [resolvable:$true] %s1846
          %s1848 = sshll.u32 %s1845, 4
          %s1849 = int_to_ptr.hbm [resolvable:$true] %s1848
          %1854 = dma.vmem_to_hbm [thread:$0]  %s1847, 1024, %s1849, %s1834, 128, 128, 8
        $region88: #{tpu_custom_call.1} parent=55 // pred_fallthru
          _
      $region56: #{tpu_custom_call.1} parent=5 // pred_fallthru
        _
      %p1855 = scmp.le.s32.totalorder 2, %s24
      // Predicated region
      $region89: #{tpu_custom_call.1} parent=5 // pred_check
        %p1856 = pneg %p1855
      $region90: #{tpu_custom_call.1} parent=5 // pred_check_branch
        %1858 = sbr.rel (%p1856) target = $region92
      $region91: #{tpu_custom_call.1} parent=5 // pred_region
        %s1859 = ssub.s32 %s24, 2
        // Predicated region
        $region93: #{tpu_custom_call.1} parent=91 // pred_check
          %p1860 = pneg %p247
        $region94: #{tpu_custom_call.1} parent=91 // pred_check_branch
          %1862 = sbr.rel (%p1860) target = $region96
        $region95: #{tpu_custom_call.1} parent=91 // pred_region
          %s1863 = sand.u32 %s232, 1
          %s1864 = scalar_lea.sflag [#allocation4], %s1863
          %s1865 = sand.u32 %s232, 1
          %s1866 = smul.addr %s1865, 64
          %s1867 = scalar_lea.vmem [#allocation14], %s1866
          %1869 = dma.done %s1864, 1024
        $region96: #{tpu_custom_call.1} parent=91 // pred_fallthru
          _
      $region92: #{tpu_custom_call.1} parent=5 // pred_fallthru
        _
    $region6: #{tpu_custom_call.1} parent=1 // loop_footer
      %s28 = sadd.s32 1, %s24
    $region7: #{tpu_custom_call.1} parent=1 // loop_footer_branch
      %23 = sbr.rel target = $region3
    $region8: #{tpu_custom_call.1} parent=1 // loop_exit
      _
    %1870 = vsyncpa [#allocation3], 1
    %s1871 = scalar_lea.sflag [#allocation3], 1
    %1872 = vsyncpa %s1871, 1
    %1873 = vsyncpa [#allocation6], 1
    %1874 = vsyncpa [#allocation9], 1
    %1875 = vsyncpa [#allocation12], 1
    %1876 = vsyncpa [#allocation4], 1
    %s1877 = scalar_lea.sflag [#allocation4], 1
    %1878 = vsyncpa %s1877, 1

</llo_original>
